<compile_context>
chip_gen: v6e
topology: v6e:2x2x1
jax: 0.10.0
libtpu: 0.0.40
codegen_flags: <defaults>
</compile_context>

<pallas_src>
import functools
import math

import jax
import jax.numpy as jnp
from jax.experimental import pallas as pl
from jax.experimental.pallas import tpu as pltpu

LANE = 128
_FUSED_VMEM_BUDGET = 12 * 1024 * 1024  # keep fused path under v5e's 16 MiB scoped default


def _round_up(x, m):
    return ((x + m - 1) // m) * m


def _pad2(a, rows, cols, dtype):
    out = jnp.zeros((rows, cols), dtype)
    return out.at[: a.shape[0], : a.shape[1]].set(a.astype(dtype))


# ------------------------------- fused forward -------------------------------

def _fused_gcn_kernel(x_ref, adj_ref, w1_ref, b1_ref, w2_ref, b2_ref, o_ref, *, nclass):
    adj = adj_ref[...]                                                   # bf16, resident
    # layer 1: support + aggregate + relu (bf16 operands, f32 accumulation)
    s1 = jnp.dot(x_ref[...], w1_ref[...], preferred_element_type=jnp.float32)
    h = jnp.maximum(
        jnp.dot(adj, s1.astype(jnp.bfloat16), preferred_element_type=jnp.float32)
        + b1_ref[...], 0.0)
    # TODO(synk): F.dropout(training=True) would need pltpu.prng_seed/prng_random_bits
    # masking; the module runs in eval mode here, so dropout is identity.
    # layer 2: support + aggregate
    s2 = jnp.dot(h.astype(jnp.bfloat16), w2_ref[...], preferred_element_type=jnp.float32)
    z = jnp.dot(adj, s2.astype(jnp.bfloat16), preferred_element_type=jnp.float32) + b2_ref[...]
    # masked log_softmax over the real class lanes only
    col = jax.lax.broadcasted_iota(jnp.int32, z.shape, 1)
    zm = jnp.where(col < nclass, z, -jnp.inf)
    m = jnp.max(zm, axis=1, keepdims=True)
    s = zm - m
    lse = jnp.log(jnp.sum(jnp.exp(s), axis=1, keepdims=True))
    o_ref[...] = (s - lse).astype(o_ref.dtype)


def _gcn_fused(x_bf, adj_bf, w1p, b1p, w2p, b2p, nclass):
    n_pad, fin_pad = x_bf.shape
    hpad = w1p.shape[1]
    cpad = w2p.shape[1]
    flops = 2 * n_pad * (fin_pad * hpad + n_pad * hpad + hpad * cpad + n_pad * cpad)
    bytes_accessed = (2 * n_pad * fin_pad + 2 * n_pad * n_pad + 2 * fin_pad * hpad
                      + 4 * hpad + 2 * hpad * cpad + 4 * cpad + 4 * n_pad * cpad)
    kernel = functools.partial(_fused_gcn_kernel, nclass=nclass)

    def full(shape):
        return pl.BlockSpec(shape, lambda i: (0, 0))

    return pl.pallas_call(
        kernel,
        out_shape=jax.ShapeDtypeStruct((n_pad, cpad), jnp.float32),
        grid=(1,),
        in_specs=[full(x_bf.shape), full(adj_bf.shape), full(w1p.shape),
                  full(b1p.shape), full(w2p.shape), full(b2p.shape)],
        out_specs=pl.BlockSpec((n_pad, cpad), lambda i: (0, 0)),
        compiler_params=pltpu.CompilerParams(dimension_semantics=("arbitrary",)),
        cost_estimate=pl.CostEstimate(flops=flops, transcendentals=n_pad * cpad,
                                      bytes_accessed=bytes_accessed),
    )(x_bf, adj_bf, w1p, b1p, w2p, b2p)


# -------------------- tiled path (large n): support = x @ W --------------------

def _support_kernel(x_ref, w_ref, o_ref):
    # bf16 operands feed the MXU at full rate; accumulate f32, store bf16 so the
    # downstream (resident) aggregation operand is half the bytes.
    o_ref[...] = jnp.dot(x_ref[...], w_ref[...],
                         preferred_element_type=jnp.float32).astype(o_ref.dtype)


def _support_matmul(x_bf, w_bf, *, tm):
    n_pad, fin_pad = x_bf.shape
    fout_pad = w_bf.shape[1]
    cost = pl.CostEstimate(
        flops=2 * n_pad * fin_pad * fout_pad, transcendentals=0,
        bytes_accessed=2 * n_pad * fin_pad + 2 * fin_pad * fout_pad + 2 * n_pad * fout_pad)
    return pl.pallas_call(
        _support_kernel,
        out_shape=jax.ShapeDtypeStruct((n_pad, fout_pad), jnp.bfloat16),
        grid=(n_pad // tm,),
        in_specs=[pl.BlockSpec((tm, fin_pad), lambda i: (i, 0)),
                  pl.BlockSpec((fin_pad, fout_pad), lambda i: (0, 0))],
        out_specs=pl.BlockSpec((tm, fout_pad), lambda i: (i, 0)),
        compiler_params=pltpu.CompilerParams(dimension_semantics=("parallel",)),
        cost_estimate=cost,
    )(x_bf, w_bf)


# -------- tiled path: out = activation(adj @ support + b), support resident --------

def _aggregate_kernel(adj_ref, s_ref, b_ref, o_ref, *scratch,
                      activation, valid_cols, tk):
    # When the output is f32 we accumulate directly into the resident output block
    # (no scratch, no extra copy); bf16 outputs accumulate into an f32 scratch.
    acc_ref = scratch[0] if scratch else o_ref
    k = pl.program_id(1)

    @pl.when(k == 0)
    def _init():
        acc_ref[...] = jnp.zeros_like(acc_ref)

    off = pl.multiple_of(k * tk, tk)
    acc_ref[...] += jnp.dot(adj_ref[...], s_ref[pl.ds(off, tk), :],
                            preferred_element_type=jnp.float32)

    @pl.when(k == pl.num_programs(1) - 1)
    def _finalize():
        z = acc_ref[...] + b_ref[...]
        if activation == "relu":
            out = jnp.maximum(z, 0.0)
        elif activation == "log_softmax":
            col = jax.lax.broadcasted_iota(jnp.int32, z.shape, 1)
            zm = jnp.where(col < valid_cols, z, -jnp.inf)
            m = jnp.max(zm, axis=1, keepdims=True)
            s = zm - m
            lse = jnp.log(jnp.sum(jnp.exp(s), axis=1, keepdims=True))
            out = s - lse
        else:
            out = z
        o_ref[...] = out.astype(o_ref.dtype)


def _aggregate(adj_bf, support_bf, b_pad, *, activation, valid_cols, out_dtype, tm, tk):
    n_pad = adj_bf.shape[0]
    fout_pad = support_bf.shape[1]
    trans = n_pad * fout_pad if activation == "log_softmax" else 0
    out_bytes = jnp.dtype(out_dtype).itemsize * n_pad * fout_pad
    cost = pl.CostEstimate(
        flops=2 * n_pad * n_pad * fout_pad, transcendentals=trans,
        bytes_accessed=2 * n_pad * n_pad + 2 * n_pad * fout_pad + 4 * fout_pad + out_bytes)
    scratch = [] if out_dtype == jnp.float32 else [pltpu.VMEM((tm, fout_pad), jnp.float32)]
    kernel = functools.partial(_aggregate_kernel, activation=activation,
                               valid_cols=valid_cols, tk=tk)
    return pl.pallas_call(
        kernel,
        out_shape=jax.ShapeDtypeStruct((n_pad, fout_pad), out_dtype),
        grid=(n_pad // tm, n_pad // tk),
        in_specs=[
            pl.BlockSpec((tm, tk), lambda i, k: (i, k)),            # adj row/col tile
            pl.BlockSpec((n_pad, fout_pad), lambda i, k: (0, 0)),   # support: VMEM-resident
            pl.BlockSpec((1, fout_pad), lambda i, k: (0, 0)),       # bias: resident
        ],
        out_specs=pl.BlockSpec((tm, fout_pad), lambda i, k: (i, 0)),
        scratch_shapes=scratch,
        compiler_params=pltpu.CompilerParams(
            dimension_semantics=("parallel", "arbitrary")),
        cost_estimate=cost,
    )(adj_bf, support_bf, b_pad)


# --------------------------------- GCN forward ---------------------------------

def gcn_forward(x, adj, w1, b1, w2, b2, *, force_tiled=False, tm=256, tk=512):
    """log_softmax(adj @ (relu(adj @ (x @ W1) + b1) @ W2) + b2, axis=1)."""
    n, nfeat = x.shape
    nhid = w1.shape[1]
    nclass = w2.shape[1]

    fin_pad = _round_up(nfeat, LANE)
    hpad = _round_up(nhid, LANE)
    cpad = _round_up(nclass, LANE)

    # Decide the path from a rough VMEM footprint of the fully fused kernel.
    n128 = _round_up(n, LANE)
    fused_bytes = (2 * n128 * n128 + 2 * n128 * fin_pad + 4 * n128 * cpad
                   + 4 * n128 * (2 * hpad + 2 * cpad)
                   + 2 * fin_pad * hpad + 2 * hpad * cpad)
    use_fused = (not force_tiled) and fused_bytes <= _FUSED_VMEM_BUDGET

    if use_fused:
        n_pad = n128
    else:
        tk = max(LANE, min(tk, 512))
        tm = max(LANE, min(tm, 256))
        n_pad = _round_up(n, math.lcm(tm, tk))   # >= 2 row tiles (both v7x TCs busy)

    # Zero-pad everything once; padding is inert (zero adj rows/cols, zero x rows)
    # and is sliced off below.  Matmul operands are bf16; biases stay f32.
    x_bf = _pad2(x, n_pad, fin_pad, jnp.bfloat16)
    adj_bf = _pad2(adj, n_pad, n_pad, jnp.bfloat16)
    w1p = _pad2(w1, fin_pad, hpad, jnp.bfloat16)
    w2p = _pad2(w2, hpad, cpad, jnp.bfloat16)
    b1p = _pad2(b1.reshape(1, -1), 1, hpad, jnp.float32)
    b2p = _pad2(b2.reshape(1, -1), 1, cpad, jnp.float32)

    if use_fused:
        out_pad = _gcn_fused(x_bf, adj_bf, w1p, b1p, w2p, b2p, nclass)
    else:
        s1 = _support_matmul(x_bf, w1p, tm=tm)
        h = _aggregate(adj_bf, s1, b1p, activation="relu", valid_cols=nhid,
                       out_dtype=jnp.bfloat16, tm=tm, tk=tk)
        # TODO(synk): dropout is identity in eval mode (see fused kernel note).
        s2 = _support_matmul(h, w2p, tm=tm)
        out_pad = _aggregate(adj_bf, s2, b2p, activation="log_softmax", valid_cols=nclass,
                             out_dtype=jnp.float32, tm=tm, tk=tk)

    # Kernel stores stay lane-dense (128-wide); strip the padding here.
    return out_pad[:n, :nclass]


def build_normalized_adj(n):
    # Fixed ring graph with self-loops, symmetrically normalized: D^-1/2 (A+I) D^-1/2
    a = jnp.eye(n, dtype=jnp.float32)
    idx = jnp.arange(n)
    a = a.at[idx, (idx + 1) % n].set(1.0)
    a = a.at[idx, (idx - 1) % n].set(1.0)
    deg = jnp.sum(a, axis=1)
    d_inv_sqrt = 1.0 / jnp.sqrt(deg)
    return a * d_inv_sqrt[:, None] * d_inv_sqrt[None, :]


if __name__ == "__main__":
    # Small shapes consistent with the module: x (num_nodes, nfeat), adj (num_nodes, num_nodes)
    num_nodes, nfeat, nhid, nclass = 256, 64, 32, 8

    key = jax.random.PRNGKey(0)
    kx, kw1, kb1, kw2, kb2 = jax.random.split(key, 5)

    x = jax.random.normal(kx, (num_nodes, nfeat), dtype=jnp.float32)
    adj = build_normalized_adj(num_nodes)

    # GraphConvolution init: uniform(-1/sqrt(out), 1/sqrt(out)) — deterministic here.
    sc1 = 1.0 / jnp.sqrt(float(nhid))
    w1 = jax.random.uniform(kw1, (nfeat, nhid), minval=-sc1, maxval=sc1, dtype=jnp.float32)
    b1 = jax.random.uniform(kb1, (1, nhid), minval=-sc1, maxval=sc1, dtype=jnp.float32)
    sc2 = 1.0 / jnp.sqrt(float(nclass))
    w2 = jax.random.uniform(kw2, (nhid, nclass), minval=-sc2, maxval=sc2, dtype=jnp.float32)
    b2 = jax.random.uniform(kb2, (1, nclass), minval=-sc2, maxval=sc2, dtype=jnp.float32)

    # Reference with the same bf16-operand / f32-accumulate matmul policy.
    def mm_bf16(a, b):
        return jnp.dot(a.astype(jnp.bfloat16), b.astype(jnp.bfloat16),
                       preferred_element_type=jnp.float32)

    h_ref = jnp.maximum(mm_bf16(adj, mm_bf16(x, w1)) + b1, 0.0)
    z_ref = mm_bf16(adj, mm_bf16(h_ref, w2)) + b2
    ref = jax.nn.log_softmax(z_ref, axis=1)

    # Pure f32 reference (looser: bf16 operands lose mantissa).
    h32 = jnp.maximum(adj @ (x @ w1) + b1, 0.0)
    z32 = adj @ (h32 @ w2) + b2
    ref32 = jax.nn.log_softmax(z32, axis=1)

    # Fused single-kernel path (auto-selected at this size).
    out = jax.block_until_ready(gcn_forward(x, adj, w1, b1, w2, b2))
    assert out.shape == (num_nodes, nclass)
    assert jnp.allclose(out, ref, atol=2e-2, rtol=2e-2), float(jnp.max(jnp.abs(out - ref)))
    assert jnp.allclose(out, ref32, atol=1e-1, rtol=1e-1)

    # Tiled (large-n) path, forced, to exercise resident-support aggregation + padding.
    out_t = jax.block_until_ready(gcn_forward(x, adj, w1, b1, w2, b2, force_tiled=True))
    assert out_t.shape == (num_nodes, nclass)
    assert jnp.allclose(out_t, ref, atol=2e-2, rtol=2e-2), float(jnp.max(jnp.abs(out_t - ref)))
    assert jnp.allclose(out_t, ref32, atol=1e-1, rtol=1e-1)

    print("KERNEL_OK")
</pallas_src>

<mosaic_0001>
module attributes {stable_mosaic.version = 11 : i64} {
  func.func @_fused_gcn_kernel(%arg0: i32, %arg1: memref<256x128xbf16, #tpu.memory_space<vmem>>, %arg2: memref<256x256xbf16, #tpu.memory_space<vmem>>, %arg3: memref<128x128xbf16, #tpu.memory_space<vmem>>, %arg4: memref<1x128xf32, #tpu.memory_space<vmem>>, %arg5: memref<128x128xbf16, #tpu.memory_space<vmem>>, %arg6: memref<1x128xf32, #tpu.memory_space<vmem>>, %arg7: memref<256x128xf32, #tpu.memory_space<vmem>>) attributes {dimension_semantics = [#tpu.dimension_semantics<arbitrary>], iteration_bounds = array<i64: 1>, scalar_prefetch = 0 : i64, scratch_operands = 0 : i64, tpu.core_type = #tpu.core_type<tc>, window_params = [{pipeline_mode = #tpu.pipeline_mode<synchronous>, transform_indices = @transform_0, window_bounds = array<i64: 256, 128>}, {pipeline_mode = #tpu.pipeline_mode<synchronous>, transform_indices = @transform_1, window_bounds = array<i64: 256, 256>}, {pipeline_mode = #tpu.pipeline_mode<synchronous>, transform_indices = @transform_2, window_bounds = array<i64: 128, 128>}, {pipeline_mode = #tpu.pipeline_mode<synchronous>, transform_indices = @transform_3, window_bounds = array<i64: 1, 128>}, {pipeline_mode = #tpu.pipeline_mode<synchronous>, transform_indices = @transform_4, window_bounds = array<i64: 128, 128>}, {pipeline_mode = #tpu.pipeline_mode<synchronous>, transform_indices = @transform_5, window_bounds = array<i64: 1, 128>}, {pipeline_mode = #tpu.pipeline_mode<synchronous>, transform_indices = @transform_6, window_bounds = array<i64: 256, 128>}]} {
    %c0 = arith.constant 0 : index
    %c0_0 = arith.constant 0 : index
    %0 = vector.load %arg2[%c0, %c0_0] : memref<256x256xbf16, #tpu.memory_space<vmem>>, vector<256x256xbf16>
    %c0_1 = arith.constant 0 : index
    %c0_2 = arith.constant 0 : index
    %1 = vector.load %arg1[%c0_1, %c0_2] : memref<256x128xbf16, #tpu.memory_space<vmem>>, vector<256x128xbf16>
    %c0_3 = arith.constant 0 : index
    %c0_4 = arith.constant 0 : index
    %2 = vector.load %arg3[%c0_3, %c0_4] : memref<128x128xbf16, #tpu.memory_space<vmem>>, vector<128x128xbf16>
    %cst = arith.constant dense<0.000000e+00> : vector<256x128xf32>
    %3 = tpu.matmul %1, %2, %cst {dimension_numbers = #tpu.dot_dimension_numbers<[1], [0], [0], [1], [0, 0, 1, 1], [], []>} : vector<256x128xbf16>, vector<128x128xbf16>, vector<256x128xf32> -> vector<256x128xf32>
    %4 = arith.truncf %3 : vector<256x128xf32> to vector<256x128xbf16>
    %cst_5 = arith.constant dense<0.000000e+00> : vector<256x128xf32>
    %5 = tpu.matmul %0, %4, %cst_5 {dimension_numbers = #tpu.dot_dimension_numbers<[1], [0], [0], [1], [0, 0, 1, 1], [], []>} : vector<256x256xbf16>, vector<256x128xbf16>, vector<256x128xf32> -> vector<256x128xf32>
    %c0_6 = arith.constant 0 : index
    %c0_7 = arith.constant 0 : index
    %6 = vector.load %arg4[%c0_6, %c0_7] : memref<1x128xf32, #tpu.memory_space<vmem>>, vector<1x128xf32>
    %7 = vector.broadcast %6 : vector<1x128xf32> to vector<256x128xf32>
    %8 = arith.addf %5, %7 : vector<256x128xf32>
    %cst_8 = arith.constant 0.000000e+00 : f32
    %9 = vector.broadcast %cst_8 : f32 to vector<256x128xf32>
    %10 = arith.maximumf %8, %9 : vector<256x128xf32>
    %11 = arith.truncf %10 : vector<256x128xf32> to vector<256x128xbf16>
    %c0_9 = arith.constant 0 : index
    %c0_10 = arith.constant 0 : index
    %12 = vector.load %arg5[%c0_9, %c0_10] : memref<128x128xbf16, #tpu.memory_space<vmem>>, vector<128x128xbf16>
    %cst_11 = arith.constant dense<0.000000e+00> : vector<256x128xf32>
    %13 = tpu.matmul %11, %12, %cst_11 {dimension_numbers = #tpu.dot_dimension_numbers<[1], [0], [0], [1], [0, 0, 1, 1], [], []>} : vector<256x128xbf16>, vector<128x128xbf16>, vector<256x128xf32> -> vector<256x128xf32>
    %14 = arith.truncf %13 : vector<256x128xf32> to vector<256x128xbf16>
    %cst_12 = arith.constant dense<0.000000e+00> : vector<256x128xf32>
    %15 = tpu.matmul %0, %14, %cst_12 {dimension_numbers = #tpu.dot_dimension_numbers<[1], [0], [0], [1], [0, 0, 1, 1], [], []>} : vector<256x256xbf16>, vector<256x128xbf16>, vector<256x128xf32> -> vector<256x128xf32>
    %c0_13 = arith.constant 0 : index
    %c0_14 = arith.constant 0 : index
    %16 = vector.load %arg6[%c0_13, %c0_14] : memref<1x128xf32, #tpu.memory_space<vmem>>, vector<1x128xf32>
    %17 = vector.broadcast %16 : vector<1x128xf32> to vector<256x128xf32>
    %18 = arith.addf %15, %17 : vector<256x128xf32>
    %19 = tpu.iota {dimensions = array<i32: 1>} : vector<256x128xi32>
    %c8_i32 = arith.constant 8 : i32
    %20 = vector.broadcast %c8_i32 : i32 to vector<256x128xi32>
    %21 = arith.cmpi slt, %19, %20 : vector<256x128xi32>
    %cst_15 = arith.constant 0xFF800000 : f32
    %22 = vector.broadcast %cst_15 : f32 to vector<256x128xf32>
    %23 = arith.select %21, %18, %22 : vector<256x128xi1>, vector<256x128xf32>
    %cst_16 = arith.constant dense<0xFF800000> : vector<256xf32>
    %24 = vector.multi_reduction <maximumf>, %23, %cst_16 [1] : vector<256x128xf32> to vector<256xf32>
    %25 = vector.shape_cast %24 : vector<256xf32> to vector<256x1xf32>
    %26 = vector.broadcast %25 : vector<256x1xf32> to vector<256x128xf32>
    %27 = arith.subf %23, %26 : vector<256x128xf32>
    %28 = math.exp %27 : vector<256x128xf32>
    %cst_17 = arith.constant dense<0.000000e+00> : vector<256xf32>
    %29 = vector.multi_reduction <add>, %28, %cst_17 [1] : vector<256x128xf32> to vector<256xf32>
    %30 = vector.shape_cast %29 : vector<256xf32> to vector<256x1xf32>
    %31 = math.log %30 : vector<256x1xf32>
    %32 = vector.broadcast %31 : vector<256x1xf32> to vector<256x128xf32>
    %33 = arith.subf %27, %32 : vector<256x128xf32>
    %c0_18 = arith.constant 0 : index
    %c0_19 = arith.constant 0 : index
    %34 = vector.load %arg7[%c0_18, %c0_19] : memref<256x128xf32, #tpu.memory_space<vmem>>, vector<256x128xf32>
    tpu.vector_store %arg7[%c0_18, %c0_19], %33 {strides = array<i32>} : memref<256x128xf32, #tpu.memory_space<vmem>>, vector<256x128xf32>,
    return
  }
  func.func @transform_0(%arg0: i32) -> (i32, i32) {
    %c0_i32 = arith.constant 0 : i32
    %c0_i32_0 = arith.constant 0 : i32
    %c0_i32_1 = arith.constant 0 : i32
    return %c0_i32, %c0_i32_0 : i32, i32
  }
  func.func @transform_1(%arg0: i32) -> (i32, i32) {
    %c0_i32 = arith.constant 0 : i32
    %c0_i32_0 = arith.constant 0 : i32
    %c0_i32_1 = arith.constant 0 : i32
    return %c0_i32, %c0_i32_0 : i32, i32
  }
  func.func @transform_2(%arg0: i32) -> (i32, i32) {
    %c0_i32 = arith.constant 0 : i32
    %c0_i32_0 = arith.constant 0 : i32
    %c0_i32_1 = arith.constant 0 : i32
    return %c0_i32, %c0_i32_0 : i32, i32
  }
  func.func @transform_3(%arg0: i32) -> (i32, i32) {
    %c0_i32 = arith.constant 0 : i32
    %c0_i32_0 = arith.constant 0 : i32
    %c0_i32_1 = arith.constant 0 : i32
    return %c0_i32, %c0_i32_0 : i32, i32
  }
  func.func @transform_4(%arg0: i32) -> (i32, i32) {
    %c0_i32 = arith.constant 0 : i32
    %c0_i32_0 = arith.constant 0 : i32
    %c0_i32_1 = arith.constant 0 : i32
    return %c0_i32, %c0_i32_0 : i32, i32
  }
  func.func @transform_5(%arg0: i32) -> (i32, i32) {
    %c0_i32 = arith.constant 0 : i32
    %c0_i32_0 = arith.constant 0 : i32
    %c0_i32_1 = arith.constant 0 : i32
    return %c0_i32, %c0_i32_0 : i32, i32
  }
  func.func @transform_6(%arg0: i32) -> (i32, i32) {
    %c0_i32 = arith.constant 0 : i32
    %c0_i32_0 = arith.constant 0 : i32
    %c0_i32_1 = arith.constant 0 : i32
    return %c0_i32, %c0_i32_0 : i32, i32
  }
}

</mosaic_0001>

<llo_original>
// kernel: tpu_custom_call.1
$region0: #{tpu_custom_call.1}
  #allocation0 [shape = 'u32[]', space=smem, size = 0x4, offset = 0x4, fixed_abs, tag = 'smem constant byte address 0x4 - core index']
  #allocation1 [shape = 'u32[144,128]{1,0:T(1,128)}', space=vmem, size = 0x12000, scoped, tag = 'internal scratch']
  %s0 = inlined_call_operand.hbm [shape: bf16[256,128], index: 0, kind: input, shape index: {}]
  %s1 = inlined_call_operand.hbm [shape: bf16[256,256], index: 1, kind: input, shape index: {}]
  %s2 = inlined_call_operand.hbm [shape: bf16[128,128], index: 2, kind: input, shape index: {}]
  %s3 = inlined_call_operand.vmem [shape: f32[1,128], index: 3, kind: input, shape index: {}]
  %s4 = inlined_call_operand.hbm [shape: bf16[128,128], index: 4, kind: input, shape index: {}]
  %s5 = inlined_call_operand.vmem [shape: f32[1,128], index: 5, kind: input, shape index: {}]
  %s6 = inlined_call_operand.hbm [shape: f32[256,128], index: 6, kind: output, shape index: {}]
  %s7 = sld [smem:[#allocation0]]
  $region50: #{tpu_custom_call.1} parent=0
    _
  %s9 = ssub.s32 1, %s7
  %s10 = scalar_select 0, %s9, %s7
  $region1: #{tpu_custom_call.1} parent=0
    #allocation2 [shape = 'u8[65536]{0}', space=vmem, size = 0x10000, scoped, tag = 'input window, operand 0, single buffered']
    #allocation3 [shape = 's32[1]{0}', space=sflag, size = 0x4, scoped, tag = 'scoped memory for tpu_custom_call.1']
    #allocation4 [shape = 's32[1]{0}', space=sflag, size = 0x4, scoped, tag = 'scoped memory for tpu_custom_call.1']
    #allocation5 [shape = 'u8[131072]{0}', space=vmem, size = 0x20000, scoped, tag = 'input window, operand 1, single buffered']
    #allocation6 [shape = 's32[1]{0}', space=sflag, size = 0x4, scoped, tag = 'scoped memory for tpu_custom_call.1']
    #allocation7 [shape = 'u8[32768]{0}', space=vmem, size = 0x8000, scoped, tag = 'input window, operand 2, single buffered']
    #allocation8 [shape = 'u8[32768]{0}', space=vmem, size = 0x8000, scoped, tag = 'input window, operand 4, single buffered']
    #allocation9 [shape = 's32[1]{0}', space=sflag, size = 0x4, scoped, tag = 'scoped memory for tpu_custom_call.1']
    #allocation10 [shape = 'u8[131072]{0}', space=vmem, size = 0x20000, scoped, tag = 'output window, operand 0, single buffered']
    %11 = vsyncpa [#allocation3], 0
    %12 = vsyncpa [#allocation6], 0
    %13 = vsyncpa [#allocation9], 0
    %14 = vsyncpa [#allocation4], 0
    // Predicated region
    $region2: #{tpu_custom_call.1} parent=1 // pred_check
      _
    $region3: #{tpu_custom_call.1} parent=1 // pred_check_branch
      %16 = sbr.rel (0) target = $region5
    $region4: #{tpu_custom_call.1} parent=1 // pred_region
      %s18 = ssub.s32 2048, 2048
      %19 = vsyncadd [#allocation3], %s18
      %s20 = sshll.u32 [#allocation2], 4
      %s21 = int_to_ptr.vmem [resolvable:$true] %s20
      %26 = dma.hbm_to_vmem [thread:$0]  %s0, 2048, %s21, [#allocation3], 64, 64, 4
    $region5: #{tpu_custom_call.1} parent=1 // pred_fallthru
      _
    // Predicated region
    $region6: #{tpu_custom_call.1} parent=1 // pred_check
      _
    $region7: #{tpu_custom_call.1} parent=1 // pred_check_branch
      %28 = sbr.rel (0) target = $region9
    $region8: #{tpu_custom_call.1} parent=1 // pred_region
      %s30 = ssub.s32 4096, 4096
      %31 = vsyncadd [#allocation6], %s30
      %s32 = sshll.u32 [#allocation5], 4
      %s33 = int_to_ptr.vmem [resolvable:$true] %s32
      %38 = dma.hbm_to_vmem [thread:$0]  %s1, 4096, %s33, [#allocation6], 128, 128, 8
    $region9: #{tpu_custom_call.1} parent=1 // pred_fallthru
      _
    // Predicated region
    $region10: #{tpu_custom_call.1} parent=1 // pred_check
      _
    $region11: #{tpu_custom_call.1} parent=1 // pred_check_branch
      %40 = sbr.rel (0) target = $region13
    $region12: #{tpu_custom_call.1} parent=1 // pred_region
      %s42 = ssub.s32 1024, 1024
      %43 = vsyncadd [#allocation6], %s42
      %s44 = sshll.u32 [#allocation7], 4
      %s45 = int_to_ptr.vmem [resolvable:$true] %s44
      %50 = dma.hbm_to_vmem [thread:$0]  %s2, 1024, %s45, [#allocation6], 64, 64, 4
    $region13: #{tpu_custom_call.1} parent=1 // pred_fallthru
      _
    // Predicated region
    $region14: #{tpu_custom_call.1} parent=1 // pred_check
      _
    $region15: #{tpu_custom_call.1} parent=1 // pred_check_branch
      %52 = sbr.rel (0) target = $region17
    $region16: #{tpu_custom_call.1} parent=1 // pred_region
      _
    $region17: #{tpu_custom_call.1} parent=1 // pred_fallthru
      _
    // Predicated region
    $region18: #{tpu_custom_call.1} parent=1 // pred_check
      _
    $region19: #{tpu_custom_call.1} parent=1 // pred_check_branch
      %54 = sbr.rel (0) target = $region21
    $region20: #{tpu_custom_call.1} parent=1 // pred_region
      %s56 = ssub.s32 1024, 1024
      %57 = vsyncadd [#allocation9], %s56
      %s58 = sshll.u32 [#allocation8], 4
      %s59 = int_to_ptr.vmem [resolvable:$true] %s58
      %64 = dma.hbm_to_vmem [thread:$0]  %s4, 1024, %s59, [#allocation9], 64, 64, 4
    $region21: #{tpu_custom_call.1} parent=1 // pred_fallthru
      _
    // Predicated region
    $region22: #{tpu_custom_call.1} parent=1 // pred_check
      _
    $region23: #{tpu_custom_call.1} parent=1 // pred_check_branch
      %66 = sbr.rel (0) target = $region25
    $region24: #{tpu_custom_call.1} parent=1 // pred_region
      _
    $region25: #{tpu_custom_call.1} parent=1 // pred_fallthru
      _
    // Predicated region
    $region26: #{tpu_custom_call.1} parent=1 // pred_check
      _
    $region27: #{tpu_custom_call.1} parent=1 // pred_check_branch
      %68 = sbr.rel (0) target = $region29
    $region28: #{tpu_custom_call.1} parent=1 // pred_region
      %69 = dma.done [#allocation3], 2048
    $region29: #{tpu_custom_call.1} parent=1 // pred_fallthru
      _
    // Predicated region
    $region30: #{tpu_custom_call.1} parent=1 // pred_check
      _
    $region31: #{tpu_custom_call.1} parent=1 // pred_check_branch
      %71 = sbr.rel (0) target = $region33
    $region32: #{tpu_custom_call.1} parent=1 // pred_region
      %72 = dma.done [#allocation6], 4096
    $region33: #{tpu_custom_call.1} parent=1 // pred_fallthru
      _
    // Predicated region
    $region34: #{tpu_custom_call.1} parent=1 // pred_check
      _
    $region35: #{tpu_custom_call.1} parent=1 // pred_check_branch
      %74 = sbr.rel (0) target = $region37
    $region36: #{tpu_custom_call.1} parent=1 // pred_region
      %75 = dma.done [#allocation6], 1024
    $region37: #{tpu_custom_call.1} parent=1 // pred_fallthru
      _
    // Predicated region
    $region38: #{tpu_custom_call.1} parent=1 // pred_check
      _
    $region39: #{tpu_custom_call.1} parent=1 // pred_check_branch
      %77 = sbr.rel (0) target = $region41
    $region40: #{tpu_custom_call.1} parent=1 // pred_region
      %78 = dma.done [#allocation9], 1024
    $region41: #{tpu_custom_call.1} parent=1 // pred_fallthru
      _
    %v80 = vld [vmem:[#allocation5] sm:$0xff]
    %v81 = vld [vmem:[#allocation5 + $0x8] sm:$0xff]
    %v82 = vld [vmem:[#allocation5 + $0x10] sm:$0xff]
    %v83 = vld [vmem:[#allocation5 + $0x18] sm:$0xff]
    %v84 = vld [vmem:[#allocation5 + $0x20] sm:$0xff]
    %v85 = vld [vmem:[#allocation5 + $0x28] sm:$0xff]
    %v86 = vld [vmem:[#allocation5 + $0x30] sm:$0xff]
    %v87 = vld [vmem:[#allocation5 + $0x38] sm:$0xff]
    %v88 = vld [vmem:[#allocation5 + $0x40] sm:$0xff]
    %v89 = vld [vmem:[#allocation5 + $0x48] sm:$0xff]
    %v90 = vld [vmem:[#allocation5 + $0x50] sm:$0xff]
    %v91 = vld [vmem:[#allocation5 + $0x58] sm:$0xff]
    %v92 = vld [vmem:[#allocation5 + $0x60] sm:$0xff]
    %v93 = vld [vmem:[#allocation5 + $0x68] sm:$0xff]
    %v94 = vld [vmem:[#allocation5 + $0x70] sm:$0xff]
    %v95 = vld [vmem:[#allocation5 + $0x78] sm:$0xff]
    %v96 = vld [vmem:[#allocation5 + $0x80] sm:$0xff]
    %v97 = vld [vmem:[#allocation5 + $0x88] sm:$0xff]
    %v98 = vld [vmem:[#allocation5 + $0x90] sm:$0xff]
    %v99 = vld [vmem:[#allocation5 + $0x98] sm:$0xff]
    %v100 = vld [vmem:[#allocation5 + $0xa0] sm:$0xff]
    %v101 = vld [vmem:[#allocation5 + $0xa8] sm:$0xff]
    %v102 = vld [vmem:[#allocation5 + $0xb0] sm:$0xff]
    %v103 = vld [vmem:[#allocation5 + $0xb8] sm:$0xff]
    %v104 = vld [vmem:[#allocation5 + $0xc0] sm:$0xff]
    %v105 = vld [vmem:[#allocation5 + $0xc8] sm:$0xff]
    %v106 = vld [vmem:[#allocation5 + $0xd0] sm:$0xff]
    %v107 = vld [vmem:[#allocation5 + $0xd8] sm:$0xff]
    %v108 = vld [vmem:[#allocation5 + $0xe0] sm:$0xff]
    %v109 = vld [vmem:[#allocation5 + $0xe8] sm:$0xff]
    %v110 = vld [vmem:[#allocation5 + $0xf0] sm:$0xff]
    %v111 = vld [vmem:[#allocation5 + $0xf8] sm:$0xff]
    %v112 = vld [vmem:[#allocation2] sm:$0xf]
    %v113 = vld [vmem:[#allocation2 + $0x4] sm:$0xf]
    %v114 = vld [vmem:[#allocation2 + $0x8] sm:$0xf]
    %v115 = vld [vmem:[#allocation2 + $0xc] sm:$0xf]
    %v116 = vld [vmem:[#allocation2 + $0x10] sm:$0xf]
    %v117 = vld [vmem:[#allocation2 + $0x14] sm:$0xf]
    %v118 = vld [vmem:[#allocation2 + $0x18] sm:$0xf]
    %v119 = vld [vmem:[#allocation2 + $0x1c] sm:$0xf]
    %v120 = vld [vmem:[#allocation2 + $0x20] sm:$0xf]
    %v121 = vld [vmem:[#allocation2 + $0x24] sm:$0xf]
    %v122 = vld [vmem:[#allocation2 + $0x28] sm:$0xf]
    %v123 = vld [vmem:[#allocation2 + $0x2c] sm:$0xf]
    %v124 = vld [vmem:[#allocation2 + $0x30] sm:$0xf]
    %v125 = vld [vmem:[#allocation2 + $0x34] sm:$0xf]
    %v126 = vld [vmem:[#allocation2 + $0x38] sm:$0xf]
    %v127 = vld [vmem:[#allocation2 + $0x3c] sm:$0xf]
    %v128 = vld [vmem:[#allocation2 + $0x40] sm:$0xf]
    %v129 = vld [vmem:[#allocation2 + $0x44] sm:$0xf]
    %v130 = vld [vmem:[#allocation2 + $0x48] sm:$0xf]
    %v131 = vld [vmem:[#allocation2 + $0x4c] sm:$0xf]
    %v132 = vld [vmem:[#allocation2 + $0x50] sm:$0xf]
    %v133 = vld [vmem:[#allocation2 + $0x54] sm:$0xf]
    %v134 = vld [vmem:[#allocation2 + $0x58] sm:$0xf]
    %v135 = vld [vmem:[#allocation2 + $0x5c] sm:$0xf]
    %v136 = vld [vmem:[#allocation2 + $0x60] sm:$0xf]
    %v137 = vld [vmem:[#allocation2 + $0x64] sm:$0xf]
    %v138 = vld [vmem:[#allocation2 + $0x68] sm:$0xf]
    %v139 = vld [vmem:[#allocation2 + $0x6c] sm:$0xf]
    %v140 = vld [vmem:[#allocation2 + $0x70] sm:$0xf]
    %v141 = vld [vmem:[#allocation2 + $0x74] sm:$0xf]
    %v142 = vld [vmem:[#allocation2 + $0x78] sm:$0xf]
    %v143 = vld [vmem:[#allocation2 + $0x7c] sm:$0xf]
    %v144 = vld [vmem:[#allocation7] sm:$0xf]
    %v145 = vld [vmem:[#allocation7 + $0x4] sm:$0xf]
    %v146 = vld [vmem:[#allocation7 + $0x8] sm:$0xf]
    %v147 = vld [vmem:[#allocation7 + $0xc] sm:$0xf]
    %v148 = vld [vmem:[#allocation7 + $0x10] sm:$0xf]
    %v149 = vld [vmem:[#allocation7 + $0x14] sm:$0xf]
    %v150 = vld [vmem:[#allocation7 + $0x18] sm:$0xf]
    %v151 = vld [vmem:[#allocation7 + $0x1c] sm:$0xf]
    %v152 = vld [vmem:[#allocation7 + $0x20] sm:$0xf]
    %v153 = vld [vmem:[#allocation7 + $0x24] sm:$0xf]
    %v154 = vld [vmem:[#allocation7 + $0x28] sm:$0xf]
    %v155 = vld [vmem:[#allocation7 + $0x2c] sm:$0xf]
    %v156 = vld [vmem:[#allocation7 + $0x30] sm:$0xf]
    %v157 = vld [vmem:[#allocation7 + $0x34] sm:$0xf]
    %v158 = vld [vmem:[#allocation7 + $0x38] sm:$0xf]
    %v159 = vld [vmem:[#allocation7 + $0x3c] sm:$0xf]
    %v192 = vunpack.c.l.b16 %v112
    %v193 = vunpack.c.l.b16 %v113
    %v194 = vunpack.c.l.b16 %v114
    %v195 = vunpack.c.l.b16 %v115
    %v196 = vunpack.c.l.b16 %v116
    %v197 = vunpack.c.l.b16 %v117
    %v198 = vunpack.c.l.b16 %v118
    %v199 = vunpack.c.l.b16 %v119
    %v200 = vunpack.c.l.b16 %v120
    %v201 = vunpack.c.l.b16 %v121
    %v202 = vunpack.c.l.b16 %v122
    %v203 = vunpack.c.l.b16 %v123
    %v204 = vunpack.c.l.b16 %v124
    %v205 = vunpack.c.l.b16 %v125
    %v206 = vunpack.c.l.b16 %v126
    %v207 = vunpack.c.l.b16 %v127
    %v208 = vunpack.c.l.b16 %v128
    %v209 = vunpack.c.l.b16 %v129
    %v210 = vunpack.c.l.b16 %v130
    %v211 = vunpack.c.l.b16 %v131
    %v212 = vunpack.c.l.b16 %v132
    %v213 = vunpack.c.l.b16 %v133
    %v214 = vunpack.c.l.b16 %v134
    %v215 = vunpack.c.l.b16 %v135
    %v216 = vunpack.c.l.b16 %v136
    %v217 = vunpack.c.l.b16 %v137
    %v218 = vunpack.c.l.b16 %v138
    %v219 = vunpack.c.l.b16 %v139
    %v220 = vunpack.c.l.b16 %v140
    %v221 = vunpack.c.l.b16 %v141
    %v222 = vunpack.c.l.b16 %v142
    %v223 = vunpack.c.l.b16 %v143
    %v224 = vpack.c.b16 %v193, %v192
    %v225 = vpack.c.b16 %v195, %v194
    %v226 = vpack.c.b16 %v197, %v196
    %v227 = vpack.c.b16 %v199, %v198
    %v228 = vpack.c.b16 %v201, %v200
    %v229 = vpack.c.b16 %v203, %v202
    %v230 = vpack.c.b16 %v205, %v204
    %v231 = vpack.c.b16 %v207, %v206
    %v232 = vpack.c.b16 %v209, %v208
    %v233 = vpack.c.b16 %v211, %v210
    %v234 = vpack.c.b16 %v213, %v212
    %v235 = vpack.c.b16 %v215, %v214
    %v236 = vpack.c.b16 %v217, %v216
    %v237 = vpack.c.b16 %v219, %v218
    %v238 = vpack.c.b16 %v221, %v220
    %v239 = vpack.c.b16 %v223, %v222
    %v272 = vunpack.c.l.b16 %v144
    %v273 = vunpack.c.l.b16 %v145
    %v274 = vunpack.c.l.b16 %v146
    %v275 = vunpack.c.l.b16 %v147
    %v276 = vunpack.c.l.b16 %v148
    %v277 = vunpack.c.l.b16 %v149
    %v278 = vunpack.c.l.b16 %v150
    %v279 = vunpack.c.l.b16 %v151
    %v280 = vunpack.c.l.b16 %v152
    %v281 = vunpack.c.l.b16 %v153
    %v282 = vunpack.c.l.b16 %v154
    %v283 = vunpack.c.l.b16 %v155
    %v284 = vunpack.c.l.b16 %v156
    %v285 = vunpack.c.l.b16 %v157
    %v286 = vunpack.c.l.b16 %v158
    %v287 = vunpack.c.l.b16 %v159
    %v288 = vpack.c.b16 %v273, %v272
    %v289 = vpack.c.b16 %v275, %v274
    %v290 = vpack.c.b16 %v277, %v276
    %v291 = vpack.c.b16 %v279, %v278
    %v292 = vpack.c.b16 %v281, %v280
    %v293 = vpack.c.b16 %v283, %v282
    %v294 = vpack.c.b16 %v285, %v284
    %v295 = vpack.c.b16 %v287, %v286
    %304 = vmatprep.subr.bf16.mxu0 0
    %305 = vmatpush1.bf16.msra.mxu0 %v295
    %306 = vmatprep.subr.bf16.mxu0 0
    %307 = vmatpush1.bf16.msra.mxu0 %v294
    %308 = vmatprep.subr.bf16.mxu0 0
    %309 = vmatpush1.bf16.msra.mxu0 %v293
    %310 = vmatprep.subr.bf16.mxu0 0
    %311 = vmatpush1.bf16.msra.mxu0 %v292
    %312 = vmatprep.subr.bf16.mxu0 0
    %313 = vmatpush1.bf16.msra.mxu0 %v291
    %314 = vmatprep.subr.bf16.mxu0 0
    %315 = vmatpush1.bf16.msra.mxu0 %v290
    %316 = vmatprep.subr.bf16.mxu0 0
    %317 = vmatpush1.bf16.msra.mxu0 %v289
    %318 = vmatprep.subr.bf16.mxu0 0
    %319 = vmatpush1.bf16.msra.mxu0 %v288
    %320 = vmatprep.subr.bf16.mxu0 0
    %321 = vmatpush2.bf16.msra.mxu0 0
    %322 = vmatprep.subr.bf16.mxu0 0
    %323 = vmatpush2.bf16.msra.mxu0 0
    %324 = vmatprep.subr.bf16.mxu0 0
    %325 = vmatpush2.bf16.msra.mxu0 0
    %326 = vmatprep.subr.bf16.mxu0 0
    %327 = vmatpush2.bf16.msra.mxu0 0
    %328 = vmatprep.subr.bf16.mxu0 0
    %329 = vmatpush2.bf16.msra.mxu0 0
    %330 = vmatprep.subr.bf16.mxu0 0
    %331 = vmatpush2.bf16.msra.mxu0 0
    %332 = vmatprep.subr.bf16.mxu0 0
    %333 = vmatpush2.bf16.msra.mxu0 0
    %334 = vmatprep.subr.bf16.mxu0 0
    %335 = vmatpush2.bf16.msra.mxu0 0
    %336 = vmatprep.mubr.bf16.mxu0 0
    %337 = vmatmul.mubr.bf16.gmra.mxu0 %v224
    %v338 = vpop.f32.mrf.mxu0
    %v339 = vadd.f32 0.0, %v338
    %v340 = vpop.f32.mrf.mxu0
    %v341 = vpop.f32.mrf.mxu0
    %v342 = vadd.f32 0.0, %v341
    %v343 = vpop.f32.mrf.mxu0
    %344 = vmatprep.mubr.bf16.mxu0 0
    %345 = vmatmul.mubr.bf16.gmra.mxu0 %v225
    %v346 = vpop.f32.mrf.mxu0
    %v347 = vadd.f32 0.0, %v346
    %v348 = vpop.f32.mrf.mxu0
    %v349 = vpop.f32.mrf.mxu0
    %v350 = vadd.f32 0.0, %v349
    %v351 = vpop.f32.mrf.mxu0
    %352 = vmatprep.mubr.bf16.mxu0 0
    %353 = vmatmul.mubr.bf16.gmra.mxu0 %v226
    %v354 = vpop.f32.mrf.mxu0
    %v355 = vadd.f32 0.0, %v354
    %v356 = vpop.f32.mrf.mxu0
    %v357 = vpop.f32.mrf.mxu0
    %v358 = vadd.f32 0.0, %v357
    %v359 = vpop.f32.mrf.mxu0
    %360 = vmatprep.mubr.bf16.mxu0 0
    %361 = vmatmul.mubr.bf16.gmra.mxu0 %v227
    %v362 = vpop.f32.mrf.mxu0
    %v363 = vadd.f32 0.0, %v362
    %v364 = vpop.f32.mrf.mxu0
    %v365 = vpop.f32.mrf.mxu0
    %v366 = vadd.f32 0.0, %v365
    %v367 = vpop.f32.mrf.mxu0
    %368 = vmatprep.mubr.bf16.mxu0 0
    %369 = vmatmul.mubr.bf16.gmra.mxu0 %v228
    %v370 = vpop.f32.mrf.mxu0
    %v371 = vadd.f32 0.0, %v370
    %v372 = vpop.f32.mrf.mxu0
    %v373 = vpop.f32.mrf.mxu0
    %v374 = vadd.f32 0.0, %v373
    %v375 = vpop.f32.mrf.mxu0
    %376 = vmatprep.mubr.bf16.mxu0 0
    %377 = vmatmul.mubr.bf16.gmra.mxu0 %v229
    %v378 = vpop.f32.mrf.mxu0
    %v379 = vadd.f32 0.0, %v378
    %v380 = vpop.f32.mrf.mxu0
    %v381 = vpop.f32.mrf.mxu0
    %v382 = vadd.f32 0.0, %v381
    %v383 = vpop.f32.mrf.mxu0
    %384 = vmatprep.mubr.bf16.mxu0 0
    %385 = vmatmul.mubr.bf16.gmra.mxu0 %v230
    %v386 = vpop.f32.mrf.mxu0
    %v387 = vadd.f32 0.0, %v386
    %v388 = vpop.f32.mrf.mxu0
    %v389 = vpop.f32.mrf.mxu0
    %v390 = vadd.f32 0.0, %v389
    %v391 = vpop.f32.mrf.mxu0
    %392 = vmatprep.mubr.bf16.mxu0 0
    %393 = vmatmul.mubr.bf16.gmra.mxu0 %v231
    %v394 = vpop.f32.mrf.mxu0
    %v395 = vadd.f32 0.0, %v394
    %v396 = vpop.f32.mrf.mxu0
    %v397 = vpop.f32.mrf.mxu0
    %v398 = vadd.f32 0.0, %v397
    %v399 = vpop.f32.mrf.mxu0
    %400 = vmatprep.mubr.bf16.mxu0 0
    %401 = vmatmul.mubr.bf16.gmra.mxu0 %v232
    %v402 = vpop.f32.mrf.mxu0
    %v403 = vadd.f32 0.0, %v402
    %v404 = vpop.f32.mrf.mxu0
    %v405 = vpop.f32.mrf.mxu0
    %v406 = vadd.f32 0.0, %v405
    %v407 = vpop.f32.mrf.mxu0
    %408 = vmatprep.mubr.bf16.mxu0 0
    %409 = vmatmul.mubr.bf16.gmra.mxu0 %v233
    %v410 = vpop.f32.mrf.mxu0
    %v411 = vadd.f32 0.0, %v410
    %v412 = vpop.f32.mrf.mxu0
    %v413 = vpop.f32.mrf.mxu0
    %v414 = vadd.f32 0.0, %v413
    %v415 = vpop.f32.mrf.mxu0
    %416 = vmatprep.mubr.bf16.mxu0 0
    %417 = vmatmul.mubr.bf16.gmra.mxu0 %v234
    %v418 = vpop.f32.mrf.mxu0
    %v419 = vadd.f32 0.0, %v418
    %v420 = vpop.f32.mrf.mxu0
    %v421 = vpop.f32.mrf.mxu0
    %v422 = vadd.f32 0.0, %v421
    %v423 = vpop.f32.mrf.mxu0
    %424 = vmatprep.mubr.bf16.mxu0 0
    %425 = vmatmul.mubr.bf16.gmra.mxu0 %v235
    %v426 = vpop.f32.mrf.mxu0
    %v427 = vadd.f32 0.0, %v426
    %v428 = vpop.f32.mrf.mxu0
    %v429 = vpop.f32.mrf.mxu0
    %v430 = vadd.f32 0.0, %v429
    %v431 = vpop.f32.mrf.mxu0
    %432 = vmatprep.mubr.bf16.mxu0 0
    %433 = vmatmul.mubr.bf16.gmra.mxu0 %v236
    %v434 = vpop.f32.mrf.mxu0
    %v435 = vadd.f32 0.0, %v434
    %v436 = vpop.f32.mrf.mxu0
    %v437 = vpop.f32.mrf.mxu0
    %v438 = vadd.f32 0.0, %v437
    %v439 = vpop.f32.mrf.mxu0
    %440 = vmatprep.mubr.bf16.mxu0 0
    %441 = vmatmul.mubr.bf16.gmra.mxu0 %v237
    %v442 = vpop.f32.mrf.mxu0
    %v443 = vadd.f32 0.0, %v442
    %v444 = vpop.f32.mrf.mxu0
    %v445 = vpop.f32.mrf.mxu0
    %v446 = vadd.f32 0.0, %v445
    %v447 = vpop.f32.mrf.mxu0
    %448 = vmatprep.mubr.bf16.mxu0 0
    %449 = vmatmul.mubr.bf16.gmra.mxu0 %v238
    %v450 = vpop.f32.mrf.mxu0
    %v451 = vadd.f32 0.0, %v450
    %v452 = vpop.f32.mrf.mxu0
    %v453 = vpop.f32.mrf.mxu0
    %v454 = vadd.f32 0.0, %v453
    %v455 = vpop.f32.mrf.mxu0
    %456 = vmatprep.mubr.bf16.mxu0 0
    %457 = vmatmul.mubr.bf16.gmra.mxu0 %v239
    %v458 = vpop.f32.mrf.mxu0
    %v459 = vadd.f32 0.0, %v458
    %v460 = vpop.f32.mrf.mxu0
    %v461 = vpop.f32.mrf.mxu0
    %v462 = vadd.f32 0.0, %v461
    %v463 = vpop.f32.mrf.mxu0
    %464 = vdwg.mxu0
    %v465 = vpack.c.bf16 %v342, %v339
    %v466 = vpack.c.bf16 %v350, %v347
    %v467 = vpack.c.bf16 %v358, %v355
    %v468 = vpack.c.bf16 %v366, %v363
    %v469 = vpack.c.bf16 %v374, %v371
    %v470 = vpack.c.bf16 %v382, %v379
    %v471 = vpack.c.bf16 %v390, %v387
    %v472 = vpack.c.bf16 %v398, %v395
    %v473 = vpack.c.bf16 %v406, %v403
    %v474 = vpack.c.bf16 %v414, %v411
    %v475 = vpack.c.bf16 %v422, %v419
    %v476 = vpack.c.bf16 %v430, %v427
    %v477 = vpack.c.bf16 %v438, %v435
    %v478 = vpack.c.bf16 %v446, %v443
    %v479 = vpack.c.bf16 %v454, %v451
    %v480 = vpack.c.bf16 %v462, %v459
    %v481 = vld [vmem:[%s3] sm:$0x1]
    %v483 = vlaneseq
    %v484 = vshrl.u32 %v483, 7
    %v485 = vsub.s32 0, %v484
    %v486 = vrot.slane %v481, %v485
    %v520 = vunpack.c.l.b16 %v80
    %v521 = vunpack.c.h.b16 %v80
    %v522 = vunpack.c.l.b16 %v81
    %v523 = vunpack.c.h.b16 %v81
    %v524 = vunpack.c.l.b16 %v82
    %v525 = vunpack.c.h.b16 %v82
    %v526 = vunpack.c.l.b16 %v83
    %v527 = vunpack.c.h.b16 %v83
    %v528 = vunpack.c.l.b16 %v84
    %v529 = vunpack.c.h.b16 %v84
    %v530 = vunpack.c.l.b16 %v85
    %v531 = vunpack.c.h.b16 %v85
    %v532 = vunpack.c.l.b16 %v86
    %v533 = vunpack.c.h.b16 %v86
    %v534 = vunpack.c.l.b16 %v87
    %v535 = vunpack.c.h.b16 %v87
    %v536 = vunpack.c.l.b16 %v88
    %v537 = vunpack.c.h.b16 %v88
    %v538 = vunpack.c.l.b16 %v89
    %v539 = vunpack.c.h.b16 %v89
    %v540 = vunpack.c.l.b16 %v90
    %v541 = vunpack.c.h.b16 %v90
    %v542 = vunpack.c.l.b16 %v91
    %v543 = vunpack.c.h.b16 %v91
    %v544 = vunpack.c.l.b16 %v92
    %v545 = vunpack.c.h.b16 %v92
    %v546 = vunpack.c.l.b16 %v93
    %v547 = vunpack.c.h.b16 %v93
    %v548 = vunpack.c.l.b16 %v94
    %v549 = vunpack.c.h.b16 %v94
    %v550 = vunpack.c.l.b16 %v95
    %v551 = vunpack.c.h.b16 %v95
    %v552 = vunpack.c.l.b16 %v96
    %v553 = vunpack.c.h.b16 %v96
    %v554 = vunpack.c.l.b16 %v97
    %v555 = vunpack.c.h.b16 %v97
    %v556 = vunpack.c.l.b16 %v98
    %v557 = vunpack.c.h.b16 %v98
    %v558 = vunpack.c.l.b16 %v99
    %v559 = vunpack.c.h.b16 %v99
    %v560 = vunpack.c.l.b16 %v100
    %v561 = vunpack.c.h.b16 %v100
    %v562 = vunpack.c.l.b16 %v101
    %v563 = vunpack.c.h.b16 %v101
    %v564 = vunpack.c.l.b16 %v102
    %v565 = vunpack.c.h.b16 %v102
    %v566 = vunpack.c.l.b16 %v103
    %v567 = vunpack.c.h.b16 %v103
    %v568 = vunpack.c.l.b16 %v104
    %v569 = vunpack.c.h.b16 %v104
    %v570 = vunpack.c.l.b16 %v105
    %v571 = vunpack.c.h.b16 %v105
    %v572 = vunpack.c.l.b16 %v106
    %v573 = vunpack.c.h.b16 %v106
    %v574 = vunpack.c.l.b16 %v107
    %v575 = vunpack.c.h.b16 %v107
    %v576 = vunpack.c.l.b16 %v108
    %v577 = vunpack.c.h.b16 %v108
    %v578 = vunpack.c.l.b16 %v109
    %v579 = vunpack.c.h.b16 %v109
    %v580 = vunpack.c.l.b16 %v110
    %v581 = vunpack.c.h.b16 %v110
    %v582 = vunpack.c.l.b16 %v111
    %v583 = vunpack.c.h.b16 %v111
    %v584 = vpack.c.b16 %v522, %v520
    %v585 = vpack.c.b16 %v523, %v521
    %v586 = vpack.c.b16 %v526, %v524
    %v587 = vpack.c.b16 %v527, %v525
    %v588 = vpack.c.b16 %v530, %v528
    %v589 = vpack.c.b16 %v531, %v529
    %v590 = vpack.c.b16 %v534, %v532
    %v591 = vpack.c.b16 %v535, %v533
    %v592 = vpack.c.b16 %v538, %v536
    %v593 = vpack.c.b16 %v539, %v537
    %v594 = vpack.c.b16 %v542, %v540
    %v595 = vpack.c.b16 %v543, %v541
    %v596 = vpack.c.b16 %v546, %v544
    %v597 = vpack.c.b16 %v547, %v545
    %v598 = vpack.c.b16 %v550, %v548
    %v599 = vpack.c.b16 %v551, %v549
    %v600 = vpack.c.b16 %v554, %v552
    %v601 = vpack.c.b16 %v555, %v553
    %v602 = vpack.c.b16 %v558, %v556
    %v603 = vpack.c.b16 %v559, %v557
    %v604 = vpack.c.b16 %v562, %v560
    %v605 = vpack.c.b16 %v563, %v561
    %v606 = vpack.c.b16 %v566, %v564
    %v607 = vpack.c.b16 %v567, %v565
    %v608 = vpack.c.b16 %v570, %v568
    %v609 = vpack.c.b16 %v571, %v569
    %v610 = vpack.c.b16 %v574, %v572
    %v611 = vpack.c.b16 %v575, %v573
    %v612 = vpack.c.b16 %v578, %v576
    %v613 = vpack.c.b16 %v579, %v577
    %v614 = vpack.c.b16 %v582, %v580
    %v615 = vpack.c.b16 %v583, %v581
    %648 = vmatprep.subr.bf16.mxu0 0
    %649 = vmatpush1.bf16.msra.mxu0 %v472
    %650 = vmatprep.subr.bf16.mxu0 0
    %651 = vmatpush1.bf16.msra.mxu0 %v471
    %652 = vmatprep.subr.bf16.mxu0 0
    %653 = vmatpush1.bf16.msra.mxu0 %v470
    %654 = vmatprep.subr.bf16.mxu0 0
    %655 = vmatpush1.bf16.msra.mxu0 %v469
    %656 = vmatprep.subr.bf16.mxu0 0
    %657 = vmatpush1.bf16.msra.mxu0 %v468
    %658 = vmatprep.subr.bf16.mxu0 0
    %659 = vmatpush1.bf16.msra.mxu0 %v467
    %660 = vmatprep.subr.bf16.mxu0 0
    %661 = vmatpush1.bf16.msra.mxu0 %v466
    %662 = vmatprep.subr.bf16.mxu0 0
    %663 = vmatpush1.bf16.msra.mxu0 %v465
    %664 = vmatprep.subr.bf16.mxu0 0
    %665 = vmatpush2.bf16.msra.mxu0 %v480
    %666 = vmatprep.subr.bf16.mxu0 0
    %667 = vmatpush2.bf16.msra.mxu0 %v479
    %668 = vmatprep.subr.bf16.mxu0 0
    %669 = vmatpush2.bf16.msra.mxu0 %v478
    %670 = vmatprep.subr.bf16.mxu0 0
    %671 = vmatpush2.bf16.msra.mxu0 %v477
    %672 = vmatprep.subr.bf16.mxu0 0
    %673 = vmatpush2.bf16.msra.mxu0 %v476
    %674 = vmatprep.subr.bf16.mxu0 0
    %675 = vmatpush2.bf16.msra.mxu0 %v475
    %676 = vmatprep.subr.bf16.mxu0 0
    %677 = vmatpush2.bf16.msra.mxu0 %v474
    %678 = vmatprep.subr.bf16.mxu0 0
    %679 = vmatpush2.bf16.msra.mxu0 %v473
    %680 = vmatprep.mubr.bf16.mxu0 %v585
    %681 = vmatmul.mubr.bf16.gmra.mxu0 %v584
    %v682 = vpop.f32.mrf.mxu0
    %v683 = vadd.f32 %v486, %v682
    %v684 = vpop.f32.mrf.mxu0
    %v685 = vpop.f32.mrf.mxu0
    %v686 = vadd.f32 %v486, %v685
    %v687 = vpop.f32.mrf.mxu0
    %688 = vmatprep.mubr.bf16.mxu0 %v587
    %689 = vmatmul.mubr.bf16.gmra.mxu0 %v586
    %v690 = vpop.f32.mrf.mxu0
    %v691 = vadd.f32 %v486, %v690
    %v692 = vpop.f32.mrf.mxu0
    %v693 = vpop.f32.mrf.mxu0
    %v694 = vadd.f32 %v486, %v693
    %v695 = vpop.f32.mrf.mxu0
    %696 = vmatprep.mubr.bf16.mxu0 %v589
    %697 = vmatmul.mubr.bf16.gmra.mxu0 %v588
    %v698 = vpop.f32.mrf.mxu0
    %v699 = vadd.f32 %v486, %v698
    %v700 = vpop.f32.mrf.mxu0
    %v701 = vpop.f32.mrf.mxu0
    %v702 = vadd.f32 %v486, %v701
    %v703 = vpop.f32.mrf.mxu0
    %704 = vmatprep.mubr.bf16.mxu0 %v591
    %705 = vmatmul.mubr.bf16.gmra.mxu0 %v590
    %v706 = vpop.f32.mrf.mxu0
    %v707 = vadd.f32 %v486, %v706
    %v708 = vpop.f32.mrf.mxu0
    %v709 = vpop.f32.mrf.mxu0
    %v710 = vadd.f32 %v486, %v709
    %v711 = vpop.f32.mrf.mxu0
    %712 = vmatprep.mubr.bf16.mxu0 %v593
    %713 = vmatmul.mubr.bf16.gmra.mxu0 %v592
    %v714 = vpop.f32.mrf.mxu0
    %v715 = vadd.f32 %v486, %v714
    %v716 = vpop.f32.mrf.mxu0
    %v717 = vpop.f32.mrf.mxu0
    %v718 = vadd.f32 %v486, %v717
    %v719 = vpop.f32.mrf.mxu0
    %720 = vmatprep.mubr.bf16.mxu0 %v595
    %721 = vmatmul.mubr.bf16.gmra.mxu0 %v594
    %v722 = vpop.f32.mrf.mxu0
    %v723 = vadd.f32 %v486, %v722
    %v724 = vpop.f32.mrf.mxu0
    %v725 = vpop.f32.mrf.mxu0
    %v726 = vadd.f32 %v486, %v725
    %v727 = vpop.f32.mrf.mxu0
    %728 = vmatprep.mubr.bf16.mxu0 %v597
    %729 = vmatmul.mubr.bf16.gmra.mxu0 %v596
    %v730 = vpop.f32.mrf.mxu0
    %v731 = vadd.f32 %v486, %v730
    %v732 = vpop.f32.mrf.mxu0
    %v733 = vpop.f32.mrf.mxu0
    %v734 = vadd.f32 %v486, %v733
    %v735 = vpop.f32.mrf.mxu0
    %736 = vmatprep.mubr.bf16.mxu0 %v599
    %737 = vmatmul.mubr.bf16.gmra.mxu0 %v598
    %v738 = vpop.f32.mrf.mxu0
    %v739 = vadd.f32 %v486, %v738
    %v740 = vpop.f32.mrf.mxu0
    %v741 = vpop.f32.mrf.mxu0
    %v742 = vadd.f32 %v486, %v741
    %v743 = vpop.f32.mrf.mxu0
    %744 = vmatprep.mubr.bf16.mxu0 %v601
    %745 = vmatmul.mubr.bf16.gmra.mxu0 %v600
    %v746 = vpop.f32.mrf.mxu0
    %v747 = vadd.f32 %v486, %v746
    %v748 = vpop.f32.mrf.mxu0
    %v749 = vpop.f32.mrf.mxu0
    %v750 = vadd.f32 %v486, %v749
    %v751 = vpop.f32.mrf.mxu0
    %752 = vmatprep.mubr.bf16.mxu0 %v603
    %753 = vmatmul.mubr.bf16.gmra.mxu0 %v602
    %v754 = vpop.f32.mrf.mxu0
    %v755 = vadd.f32 %v486, %v754
    %v756 = vpop.f32.mrf.mxu0
    %v757 = vpop.f32.mrf.mxu0
    %v758 = vadd.f32 %v486, %v757
    %v759 = vpop.f32.mrf.mxu0
    %760 = vmatprep.mubr.bf16.mxu0 %v605
    %761 = vmatmul.mubr.bf16.gmra.mxu0 %v604
    %v762 = vpop.f32.mrf.mxu0
    %v763 = vadd.f32 %v486, %v762
    %v764 = vpop.f32.mrf.mxu0
    %v765 = vpop.f32.mrf.mxu0
    %v766 = vadd.f32 %v486, %v765
    %v767 = vpop.f32.mrf.mxu0
    %768 = vmatprep.mubr.bf16.mxu0 %v607
    %769 = vmatmul.mubr.bf16.gmra.mxu0 %v606
    %v770 = vpop.f32.mrf.mxu0
    %v771 = vadd.f32 %v486, %v770
    %v772 = vpop.f32.mrf.mxu0
    %v773 = vpop.f32.mrf.mxu0
    %v774 = vadd.f32 %v486, %v773
    %v775 = vpop.f32.mrf.mxu0
    %776 = vmatprep.mubr.bf16.mxu0 %v609
    %777 = vmatmul.mubr.bf16.gmra.mxu0 %v608
    %v778 = vpop.f32.mrf.mxu0
    %v779 = vadd.f32 %v486, %v778
    %v780 = vpop.f32.mrf.mxu0
    %v781 = vpop.f32.mrf.mxu0
    %v782 = vadd.f32 %v486, %v781
    %v783 = vpop.f32.mrf.mxu0
    %784 = vmatprep.mubr.bf16.mxu0 %v611
    %785 = vmatmul.mubr.bf16.gmra.mxu0 %v610
    %v786 = vpop.f32.mrf.mxu0
    %v787 = vadd.f32 %v486, %v786
    %v788 = vpop.f32.mrf.mxu0
    %v789 = vpop.f32.mrf.mxu0
    %v790 = vadd.f32 %v486, %v789
    %v791 = vpop.f32.mrf.mxu0
    %792 = vmatprep.mubr.bf16.mxu0 %v613
    %793 = vmatmul.mubr.bf16.gmra.mxu0 %v612
    %v794 = vpop.f32.mrf.mxu0
    %v795 = vadd.f32 %v486, %v794
    %v796 = vpop.f32.mrf.mxu0
    %v797 = vpop.f32.mrf.mxu0
    %v798 = vadd.f32 %v486, %v797
    %v799 = vpop.f32.mrf.mxu0
    %800 = vmatprep.mubr.bf16.mxu0 %v615
    %801 = vmatmul.mubr.bf16.gmra.mxu0 %v614
    %v802 = vpop.f32.mrf.mxu0
    %v803 = vadd.f32 %v486, %v802
    %v804 = vpop.f32.mrf.mxu0
    %v805 = vpop.f32.mrf.mxu0
    %v806 = vadd.f32 %v486, %v805
    %v807 = vpop.f32.mrf.mxu0
    %808 = vdwg.mxu0
    %v809 = vmax.f32 %v683, 0.0
    %v810 = vmax.f32 %v686, 0.0
    %v811 = vmax.f32 %v691, 0.0
    %v812 = vmax.f32 %v694, 0.0
    %v813 = vmax.f32 %v699, 0.0
    %v814 = vmax.f32 %v702, 0.0
    %v815 = vmax.f32 %v707, 0.0
    %v816 = vmax.f32 %v710, 0.0
    %v817 = vmax.f32 %v715, 0.0
    %v818 = vmax.f32 %v718, 0.0
    %v819 = vmax.f32 %v723, 0.0
    %v820 = vmax.f32 %v726, 0.0
    %v821 = vmax.f32 %v731, 0.0
    %v822 = vmax.f32 %v734, 0.0
    %v823 = vmax.f32 %v739, 0.0
    %v824 = vmax.f32 %v742, 0.0
    %v825 = vmax.f32 %v747, 0.0
    %v826 = vmax.f32 %v750, 0.0
    %v827 = vmax.f32 %v755, 0.0
    %v828 = vmax.f32 %v758, 0.0
    %v829 = vmax.f32 %v763, 0.0
    %v830 = vmax.f32 %v766, 0.0
    %v831 = vmax.f32 %v771, 0.0
    %v832 = vmax.f32 %v774, 0.0
    %v833 = vmax.f32 %v779, 0.0
    %v834 = vmax.f32 %v782, 0.0
    %v835 = vmax.f32 %v787, 0.0
    %v836 = vmax.f32 %v790, 0.0
    %v837 = vmax.f32 %v795, 0.0
    %v838 = vmax.f32 %v798, 0.0
    %v839 = vmax.f32 %v803, 0.0
    %v840 = vmax.f32 %v806, 0.0
    %v841 = vpack.c.bf16 %v810, %v809
    %v842 = vpack.c.bf16 %v812, %v811
    %v843 = vpack.c.bf16 %v814, %v813
    %v844 = vpack.c.bf16 %v816, %v815
    %v845 = vpack.c.bf16 %v818, %v817
    %v846 = vpack.c.bf16 %v820, %v819
    %v847 = vpack.c.bf16 %v822, %v821
    %v848 = vpack.c.bf16 %v824, %v823
    %v849 = vpack.c.bf16 %v826, %v825
    %v850 = vpack.c.bf16 %v828, %v827
    %v851 = vpack.c.bf16 %v830, %v829
    %v852 = vpack.c.bf16 %v832, %v831
    %v853 = vpack.c.bf16 %v834, %v833
    %v854 = vpack.c.bf16 %v836, %v835
    %v855 = vpack.c.bf16 %v838, %v837
    %v856 = vpack.c.bf16 %v840, %v839
    %v857 = vld [vmem:[#allocation8] sm:$0xf]
    %v858 = vld [vmem:[#allocation8 + $0x4] sm:$0xf]
    %v859 = vld [vmem:[#allocation8 + $0x8] sm:$0xf]
    %v860 = vld [vmem:[#allocation8 + $0xc] sm:$0xf]
    %v861 = vld [vmem:[#allocation8 + $0x10] sm:$0xf]
    %v862 = vld [vmem:[#allocation8 + $0x14] sm:$0xf]
    %v863 = vld [vmem:[#allocation8 + $0x18] sm:$0xf]
    %v864 = vld [vmem:[#allocation8 + $0x1c] sm:$0xf]
    %v865 = vld [vmem:[#allocation8 + $0x20] sm:$0xf]
    %v866 = vld [vmem:[#allocation8 + $0x24] sm:$0xf]
    %v867 = vld [vmem:[#allocation8 + $0x28] sm:$0xf]
    %v868 = vld [vmem:[#allocation8 + $0x2c] sm:$0xf]
    %v869 = vld [vmem:[#allocation8 + $0x30] sm:$0xf]
    %v870 = vld [vmem:[#allocation8 + $0x34] sm:$0xf]
    %v871 = vld [vmem:[#allocation8 + $0x38] sm:$0xf]
    %v872 = vld [vmem:[#allocation8 + $0x3c] sm:$0xf]
    %v889 = vunpack.c.l.b16 %v857
    %v890 = vunpack.c.l.b16 %v858
    %v891 = vunpack.c.l.b16 %v859
    %v892 = vunpack.c.l.b16 %v860
    %v893 = vunpack.c.l.b16 %v861
    %v894 = vunpack.c.l.b16 %v862
    %v895 = vunpack.c.l.b16 %v863
    %v896 = vunpack.c.l.b16 %v864
    %v897 = vunpack.c.l.b16 %v865
    %v898 = vunpack.c.l.b16 %v866
    %v899 = vunpack.c.l.b16 %v867
    %v900 = vunpack.c.l.b16 %v868
    %v901 = vunpack.c.l.b16 %v869
    %v902 = vunpack.c.l.b16 %v870
    %v903 = vunpack.c.l.b16 %v871
    %v904 = vunpack.c.l.b16 %v872
    %v905 = vpack.c.b16 %v890, %v889
    %v906 = vpack.c.b16 %v892, %v891
    %v907 = vpack.c.b16 %v894, %v893
    %v908 = vpack.c.b16 %v896, %v895
    %v909 = vpack.c.b16 %v898, %v897
    %v910 = vpack.c.b16 %v900, %v899
    %v911 = vpack.c.b16 %v902, %v901
    %v912 = vpack.c.b16 %v904, %v903
    %921 = vmatprep.subr.bf16.mxu0 0
    %922 = vmatpush1.bf16.msra.mxu0 %v912
    %923 = vmatprep.subr.bf16.mxu0 0
    %924 = vmatpush1.bf16.msra.mxu0 %v911
    %925 = vmatprep.subr.bf16.mxu0 0
    %926 = vmatpush1.bf16.msra.mxu0 %v910
    %927 = vmatprep.subr.bf16.mxu0 0
    %928 = vmatpush1.bf16.msra.mxu0 %v909
    %929 = vmatprep.subr.bf16.mxu0 0
    %930 = vmatpush1.bf16.msra.mxu0 %v908
    %931 = vmatprep.subr.bf16.mxu0 0
    %932 = vmatpush1.bf16.msra.mxu0 %v907
    %933 = vmatprep.subr.bf16.mxu0 0
    %934 = vmatpush1.bf16.msra.mxu0 %v906
    %935 = vmatprep.subr.bf16.mxu0 0
    %936 = vmatpush1.bf16.msra.mxu0 %v905
    %937 = vmatprep.subr.bf16.mxu0 0
    %938 = vmatpush2.bf16.msra.mxu0 0
    %939 = vmatprep.subr.bf16.mxu0 0
    %940 = vmatpush2.bf16.msra.mxu0 0
    %941 = vmatprep.subr.bf16.mxu0 0
    %942 = vmatpush2.bf16.msra.mxu0 0
    %943 = vmatprep.subr.bf16.mxu0 0
    %944 = vmatpush2.bf16.msra.mxu0 0
    %945 = vmatprep.subr.bf16.mxu0 0
    %946 = vmatpush2.bf16.msra.mxu0 0
    %947 = vmatprep.subr.bf16.mxu0 0
    %948 = vmatpush2.bf16.msra.mxu0 0
    %949 = vmatprep.subr.bf16.mxu0 0
    %950 = vmatpush2.bf16.msra.mxu0 0
    %951 = vmatprep.subr.bf16.mxu0 0
    %952 = vmatpush2.bf16.msra.mxu0 0
    %953 = vmatprep.mubr.bf16.mxu0 0
    %954 = vmatmul.mubr.bf16.gmra.mxu0 %v841
    %v955 = vpop.f32.mrf.mxu0
    %v956 = vadd.f32 0.0, %v955
    %v957 = vpop.f32.mrf.mxu0
    %v958 = vpop.f32.mrf.mxu0
    %v959 = vadd.f32 0.0, %v958
    %v960 = vpop.f32.mrf.mxu0
    %961 = vmatprep.mubr.bf16.mxu0 0
    %962 = vmatmul.mubr.bf16.gmra.mxu0 %v842
    %v963 = vpop.f32.mrf.mxu0
    %v964 = vadd.f32 0.0, %v963
    %v965 = vpop.f32.mrf.mxu0
    %v966 = vpop.f32.mrf.mxu0
    %v967 = vadd.f32 0.0, %v966
    %v968 = vpop.f32.mrf.mxu0
    %969 = vmatprep.mubr.bf16.mxu0 0
    %970 = vmatmul.mubr.bf16.gmra.mxu0 %v843
    %v971 = vpop.f32.mrf.mxu0
    %v972 = vadd.f32 0.0, %v971
    %v973 = vpop.f32.mrf.mxu0
    %v974 = vpop.f32.mrf.mxu0
    %v975 = vadd.f32 0.0, %v974
    %v976 = vpop.f32.mrf.mxu0
    %977 = vmatprep.mubr.bf16.mxu0 0
    %978 = vmatmul.mubr.bf16.gmra.mxu0 %v844
    %v979 = vpop.f32.mrf.mxu0
    %v980 = vadd.f32 0.0, %v979
    %v981 = vpop.f32.mrf.mxu0
    %v982 = vpop.f32.mrf.mxu0
    %v983 = vadd.f32 0.0, %v982
    %v984 = vpop.f32.mrf.mxu0
    %985 = vmatprep.mubr.bf16.mxu0 0
    %986 = vmatmul.mubr.bf16.gmra.mxu0 %v845
    %v987 = vpop.f32.mrf.mxu0
    %v988 = vadd.f32 0.0, %v987
    %v989 = vpop.f32.mrf.mxu0
    %v990 = vpop.f32.mrf.mxu0
    %v991 = vadd.f32 0.0, %v990
    %v992 = vpop.f32.mrf.mxu0
    %993 = vmatprep.mubr.bf16.mxu0 0
    %994 = vmatmul.mubr.bf16.gmra.mxu0 %v846
    %v995 = vpop.f32.mrf.mxu0
    %v996 = vadd.f32 0.0, %v995
    %v997 = vpop.f32.mrf.mxu0
    %v998 = vpop.f32.mrf.mxu0
    %v999 = vadd.f32 0.0, %v998
    %v1000 = vpop.f32.mrf.mxu0
    %1001 = vmatprep.mubr.bf16.mxu0 0
    %1002 = vmatmul.mubr.bf16.gmra.mxu0 %v847
    %v1003 = vpop.f32.mrf.mxu0
    %v1004 = vadd.f32 0.0, %v1003
    %v1005 = vpop.f32.mrf.mxu0
    %v1006 = vpop.f32.mrf.mxu0
    %v1007 = vadd.f32 0.0, %v1006
    %v1008 = vpop.f32.mrf.mxu0
    %1009 = vmatprep.mubr.bf16.mxu0 0
    %1010 = vmatmul.mubr.bf16.gmra.mxu0 %v848
    %v1011 = vpop.f32.mrf.mxu0
    %v1012 = vadd.f32 0.0, %v1011
    %v1013 = vpop.f32.mrf.mxu0
    %v1014 = vpop.f32.mrf.mxu0
    %v1015 = vadd.f32 0.0, %v1014
    %v1016 = vpop.f32.mrf.mxu0
    %1017 = vmatprep.mubr.bf16.mxu0 0
    %1018 = vmatmul.mubr.bf16.gmra.mxu0 %v849
    %v1019 = vpop.f32.mrf.mxu0
    %v1020 = vadd.f32 0.0, %v1019
    %v1021 = vpop.f32.mrf.mxu0
    %v1022 = vpop.f32.mrf.mxu0
    %v1023 = vadd.f32 0.0, %v1022
    %v1024 = vpop.f32.mrf.mxu0
    %1025 = vmatprep.mubr.bf16.mxu0 0
    %1026 = vmatmul.mubr.bf16.gmra.mxu0 %v850
    %v1027 = vpop.f32.mrf.mxu0
    %v1028 = vadd.f32 0.0, %v1027
    %v1029 = vpop.f32.mrf.mxu0
    %v1030 = vpop.f32.mrf.mxu0
    %v1031 = vadd.f32 0.0, %v1030
    %v1032 = vpop.f32.mrf.mxu0
    %1033 = vmatprep.mubr.bf16.mxu0 0
    %1034 = vmatmul.mubr.bf16.gmra.mxu0 %v851
    %v1035 = vpop.f32.mrf.mxu0
    %v1036 = vadd.f32 0.0, %v1035
    %v1037 = vpop.f32.mrf.mxu0
    %v1038 = vpop.f32.mrf.mxu0
    %v1039 = vadd.f32 0.0, %v1038
    %v1040 = vpop.f32.mrf.mxu0
    %1041 = vmatprep.mubr.bf16.mxu0 0
    %1042 = vmatmul.mubr.bf16.gmra.mxu0 %v852
    %v1043 = vpop.f32.mrf.mxu0
    %v1044 = vadd.f32 0.0, %v1043
    %v1045 = vpop.f32.mrf.mxu0
    %v1046 = vpop.f32.mrf.mxu0
    %v1047 = vadd.f32 0.0, %v1046
    %v1048 = vpop.f32.mrf.mxu0
    %1049 = vmatprep.mubr.bf16.mxu0 0
    %1050 = vmatmul.mubr.bf16.gmra.mxu0 %v853
    %v1051 = vpop.f32.mrf.mxu0
    %v1052 = vadd.f32 0.0, %v1051
    %v1053 = vpop.f32.mrf.mxu0
    %v1054 = vpop.f32.mrf.mxu0
    %v1055 = vadd.f32 0.0, %v1054
    %v1056 = vpop.f32.mrf.mxu0
    %1057 = vmatprep.mubr.bf16.mxu0 0
    %1058 = vmatmul.mubr.bf16.gmra.mxu0 %v854
    %v1059 = vpop.f32.mrf.mxu0
    %v1060 = vadd.f32 0.0, %v1059
    %v1061 = vpop.f32.mrf.mxu0
    %v1062 = vpop.f32.mrf.mxu0
    %v1063 = vadd.f32 0.0, %v1062
    %v1064 = vpop.f32.mrf.mxu0
    %1065 = vmatprep.mubr.bf16.mxu0 0
    %1066 = vmatmul.mubr.bf16.gmra.mxu0 %v855
    %v1067 = vpop.f32.mrf.mxu0
    %v1068 = vadd.f32 0.0, %v1067
    %v1069 = vpop.f32.mrf.mxu0
    %v1070 = vpop.f32.mrf.mxu0
    %v1071 = vadd.f32 0.0, %v1070
    %v1072 = vpop.f32.mrf.mxu0
    %1073 = vmatprep.mubr.bf16.mxu0 0
    %1074 = vmatmul.mubr.bf16.gmra.mxu0 %v856
    %v1075 = vpop.f32.mrf.mxu0
    %v1076 = vadd.f32 0.0, %v1075
    %v1077 = vpop.f32.mrf.mxu0
    %v1078 = vpop.f32.mrf.mxu0
    %v1079 = vadd.f32 0.0, %v1078
    %v1080 = vpop.f32.mrf.mxu0
    %1081 = vdwg.mxu0
    %v1082 = vpack.c.bf16 %v959, %v956
    %v1083 = vpack.c.bf16 %v967, %v964
    %v1084 = vpack.c.bf16 %v975, %v972
    %v1085 = vpack.c.bf16 %v983, %v980
    %v1086 = vpack.c.bf16 %v991, %v988
    %v1087 = vpack.c.bf16 %v999, %v996
    %v1088 = vpack.c.bf16 %v1007, %v1004
    %v1089 = vpack.c.bf16 %v1015, %v1012
    %v1090 = vpack.c.bf16 %v1023, %v1020
    %v1091 = vpack.c.bf16 %v1031, %v1028
    %v1092 = vpack.c.bf16 %v1039, %v1036
    %v1093 = vpack.c.bf16 %v1047, %v1044
    %v1094 = vpack.c.bf16 %v1055, %v1052
    %v1095 = vpack.c.bf16 %v1063, %v1060
    %v1096 = vpack.c.bf16 %v1071, %v1068
    %v1097 = vpack.c.bf16 %v1079, %v1076
    %v1098 = vld [vmem:[%s5] sm:$0x1]
    %v1100 = vlaneseq
    %v1101 = vshrl.u32 %v1100, 7
    %v1102 = vsub.s32 0, %v1101
    %v1103 = vrot.slane %v1098, %v1102
    %1105 = vmatprep.subr.bf16.mxu0 0
    %1106 = vmatpush1.bf16.msra.mxu0 %v1089
    %1107 = vmatprep.subr.bf16.mxu0 0
    %1108 = vmatpush1.bf16.msra.mxu0 %v1088
    %1109 = vmatprep.subr.bf16.mxu0 0
    %1110 = vmatpush1.bf16.msra.mxu0 %v1087
    %1111 = vmatprep.subr.bf16.mxu0 0
    %1112 = vmatpush1.bf16.msra.mxu0 %v1086
    %1113 = vmatprep.subr.bf16.mxu0 0
    %1114 = vmatpush1.bf16.msra.mxu0 %v1085
    %1115 = vmatprep.subr.bf16.mxu0 0
    %1116 = vmatpush1.bf16.msra.mxu0 %v1084
    %1117 = vmatprep.subr.bf16.mxu0 0
    %1118 = vmatpush1.bf16.msra.mxu0 %v1083
    %1119 = vmatprep.subr.bf16.mxu0 0
    %1120 = vmatpush1.bf16.msra.mxu0 %v1082
    %1121 = vmatprep.subr.bf16.mxu0 0
    %1122 = vmatpush2.bf16.msra.mxu0 %v1097
    %1123 = vmatprep.subr.bf16.mxu0 0
    %1124 = vmatpush2.bf16.msra.mxu0 %v1096
    %1125 = vmatprep.subr.bf16.mxu0 0
    %1126 = vmatpush2.bf16.msra.mxu0 %v1095
    %1127 = vmatprep.subr.bf16.mxu0 0
    %1128 = vmatpush2.bf16.msra.mxu0 %v1094
    %1129 = vmatprep.subr.bf16.mxu0 0
    %1130 = vmatpush2.bf16.msra.mxu0 %v1093
    %1131 = vmatprep.subr.bf16.mxu0 0
    %1132 = vmatpush2.bf16.msra.mxu0 %v1092
    %1133 = vmatprep.subr.bf16.mxu0 0
    %1134 = vmatpush2.bf16.msra.mxu0 %v1091
    %1135 = vmatprep.subr.bf16.mxu0 0
    %1136 = vmatpush2.bf16.msra.mxu0 %v1090
    %1137 = vmatprep.mubr.bf16.mxu0 %v585
    %1138 = vmatmul.mubr.bf16.gmra.mxu0 %v584
    %v1139 = vpop.f32.mrf.mxu0
    %v1140 = vadd.f32 %v1103, %v1139
    %v1141 = vpop.f32.mrf.mxu0
    %v1142 = vpop.f32.mrf.mxu0
    %v1143 = vadd.f32 %v1103, %v1142
    %v1144 = vpop.f32.mrf.mxu0
    %1145 = vmatprep.mubr.bf16.mxu0 %v587
    %1146 = vmatmul.mubr.bf16.gmra.mxu0 %v586
    %v1147 = vpop.f32.mrf.mxu0
    %v1148 = vadd.f32 %v1103, %v1147
    %v1149 = vpop.f32.mrf.mxu0
    %v1150 = vpop.f32.mrf.mxu0
    %v1151 = vadd.f32 %v1103, %v1150
    %v1152 = vpop.f32.mrf.mxu0
    %1153 = vmatprep.mubr.bf16.mxu0 %v589
    %1154 = vmatmul.mubr.bf16.gmra.mxu0 %v588
    %v1155 = vpop.f32.mrf.mxu0
    %v1156 = vadd.f32 %v1103, %v1155
    %v1157 = vpop.f32.mrf.mxu0
    %v1158 = vpop.f32.mrf.mxu0
    %v1159 = vadd.f32 %v1103, %v1158
    %v1160 = vpop.f32.mrf.mxu0
    %1161 = vmatprep.mubr.bf16.mxu0 %v591
    %1162 = vmatmul.mubr.bf16.gmra.mxu0 %v590
    %v1163 = vpop.f32.mrf.mxu0
    %v1164 = vadd.f32 %v1103, %v1163
    %v1165 = vpop.f32.mrf.mxu0
    %v1166 = vpop.f32.mrf.mxu0
    %v1167 = vadd.f32 %v1103, %v1166
    %v1168 = vpop.f32.mrf.mxu0
    %1169 = vmatprep.mubr.bf16.mxu0 %v593
    %1170 = vmatmul.mubr.bf16.gmra.mxu0 %v592
    %v1171 = vpop.f32.mrf.mxu0
    %v1172 = vadd.f32 %v1103, %v1171
    %v1173 = vpop.f32.mrf.mxu0
    %v1174 = vpop.f32.mrf.mxu0
    %v1175 = vadd.f32 %v1103, %v1174
    %v1176 = vpop.f32.mrf.mxu0
    %1177 = vmatprep.mubr.bf16.mxu0 %v595
    %1178 = vmatmul.mubr.bf16.gmra.mxu0 %v594
    %v1179 = vpop.f32.mrf.mxu0
    %v1180 = vadd.f32 %v1103, %v1179
    %v1181 = vpop.f32.mrf.mxu0
    %v1182 = vpop.f32.mrf.mxu0
    %v1183 = vadd.f32 %v1103, %v1182
    %v1184 = vpop.f32.mrf.mxu0
    %1185 = vmatprep.mubr.bf16.mxu0 %v597
    %1186 = vmatmul.mubr.bf16.gmra.mxu0 %v596
    %v1187 = vpop.f32.mrf.mxu0
    %v1188 = vadd.f32 %v1103, %v1187
    %v1189 = vpop.f32.mrf.mxu0
    %v1190 = vpop.f32.mrf.mxu0
    %v1191 = vadd.f32 %v1103, %v1190
    %v1192 = vpop.f32.mrf.mxu0
    %1193 = vmatprep.mubr.bf16.mxu0 %v599
    %1194 = vmatmul.mubr.bf16.gmra.mxu0 %v598
    %v1195 = vpop.f32.mrf.mxu0
    %v1196 = vadd.f32 %v1103, %v1195
    %v1197 = vpop.f32.mrf.mxu0
    %v1198 = vpop.f32.mrf.mxu0
    %v1199 = vadd.f32 %v1103, %v1198
    %v1200 = vpop.f32.mrf.mxu0
    %1201 = vmatprep.mubr.bf16.mxu0 %v601
    %1202 = vmatmul.mubr.bf16.gmra.mxu0 %v600
    %v1203 = vpop.f32.mrf.mxu0
    %v1204 = vadd.f32 %v1103, %v1203
    %v1205 = vpop.f32.mrf.mxu0
    %v1206 = vpop.f32.mrf.mxu0
    %v1207 = vadd.f32 %v1103, %v1206
    %v1208 = vpop.f32.mrf.mxu0
    %1209 = vmatprep.mubr.bf16.mxu0 %v603
    %1210 = vmatmul.mubr.bf16.gmra.mxu0 %v602
    %v1211 = vpop.f32.mrf.mxu0
    %v1212 = vadd.f32 %v1103, %v1211
    %v1213 = vpop.f32.mrf.mxu0
    %v1214 = vpop.f32.mrf.mxu0
    %v1215 = vadd.f32 %v1103, %v1214
    %v1216 = vpop.f32.mrf.mxu0
    %1217 = vmatprep.mubr.bf16.mxu0 %v605
    %1218 = vmatmul.mubr.bf16.gmra.mxu0 %v604
    %v1219 = vpop.f32.mrf.mxu0
    %v1220 = vadd.f32 %v1103, %v1219
    %v1221 = vpop.f32.mrf.mxu0
    %v1222 = vpop.f32.mrf.mxu0
    %v1223 = vadd.f32 %v1103, %v1222
    %v1224 = vpop.f32.mrf.mxu0
    %1225 = vmatprep.mubr.bf16.mxu0 %v607
    %1226 = vmatmul.mubr.bf16.gmra.mxu0 %v606
    %v1227 = vpop.f32.mrf.mxu0
    %v1228 = vadd.f32 %v1103, %v1227
    %v1229 = vpop.f32.mrf.mxu0
    %v1230 = vpop.f32.mrf.mxu0
    %v1231 = vadd.f32 %v1103, %v1230
    %v1232 = vpop.f32.mrf.mxu0
    %1233 = vmatprep.mubr.bf16.mxu0 %v609
    %1234 = vmatmul.mubr.bf16.gmra.mxu0 %v608
    %v1235 = vpop.f32.mrf.mxu0
    %v1236 = vadd.f32 %v1103, %v1235
    %v1237 = vpop.f32.mrf.mxu0
    %v1238 = vpop.f32.mrf.mxu0
    %v1239 = vadd.f32 %v1103, %v1238
    %v1240 = vpop.f32.mrf.mxu0
    %1241 = vmatprep.mubr.bf16.mxu0 %v611
    %1242 = vmatmul.mubr.bf16.gmra.mxu0 %v610
    %v1243 = vpop.f32.mrf.mxu0
    %v1244 = vadd.f32 %v1103, %v1243
    %v1245 = vpop.f32.mrf.mxu0
    %v1246 = vpop.f32.mrf.mxu0
    %v1247 = vadd.f32 %v1103, %v1246
    %v1248 = vpop.f32.mrf.mxu0
    %1249 = vmatprep.mubr.bf16.mxu0 %v613
    %1250 = vmatmul.mubr.bf16.gmra.mxu0 %v612
    %v1251 = vpop.f32.mrf.mxu0
    %v1252 = vadd.f32 %v1103, %v1251
    %v1253 = vpop.f32.mrf.mxu0
    %v1254 = vpop.f32.mrf.mxu0
    %v1255 = vadd.f32 %v1103, %v1254
    %v1256 = vpop.f32.mrf.mxu0
    %1257 = vmatprep.mubr.bf16.mxu0 %v615
    %1258 = vmatmul.mubr.bf16.gmra.mxu0 %v614
    %v1259 = vpop.f32.mrf.mxu0
    %v1260 = vadd.f32 %v1103, %v1259
    %v1261 = vpop.f32.mrf.mxu0
    %v1262 = vpop.f32.mrf.mxu0
    %v1263 = vadd.f32 %v1103, %v1262
    %v1264 = vpop.f32.mrf.mxu0
    %1265 = vdwg.mxu0
    %v1266 = vlaneseq
    %v1267 = vand.u32 %v1266, 127
    %vm1268 = vcmp.lt.s32.totalorder %v1267, 8
    %v1269 = vsel %vm1268, %v1140, -inf
    %v1270 = vsel %vm1268, %v1143, -inf
    %v1271 = vsel %vm1268, %v1148, -inf
    %v1272 = vsel %vm1268, %v1151, -inf
    %v1273 = vsel %vm1268, %v1156, -inf
    %v1274 = vsel %vm1268, %v1159, -inf
    %v1275 = vsel %vm1268, %v1164, -inf
    %v1276 = vsel %vm1268, %v1167, -inf
    %v1277 = vsel %vm1268, %v1172, -inf
    %v1278 = vsel %vm1268, %v1175, -inf
    %v1279 = vsel %vm1268, %v1180, -inf
    %v1280 = vsel %vm1268, %v1183, -inf
    %v1281 = vsel %vm1268, %v1188, -inf
    %v1282 = vsel %vm1268, %v1191, -inf
    %v1283 = vsel %vm1268, %v1196, -inf
    %v1284 = vsel %vm1268, %v1199, -inf
    %v1285 = vsel %vm1268, %v1204, -inf
    %v1286 = vsel %vm1268, %v1207, -inf
    %v1287 = vsel %vm1268, %v1212, -inf
    %v1288 = vsel %vm1268, %v1215, -inf
    %v1289 = vsel %vm1268, %v1220, -inf
    %v1290 = vsel %vm1268, %v1223, -inf
    %v1291 = vsel %vm1268, %v1228, -inf
    %v1292 = vsel %vm1268, %v1231, -inf
    %v1293 = vsel %vm1268, %v1236, -inf
    %v1294 = vsel %vm1268, %v1239, -inf
    %v1295 = vsel %vm1268, %v1244, -inf
    %v1296 = vsel %vm1268, %v1247, -inf
    %v1297 = vsel %vm1268, %v1252, -inf
    %v1298 = vsel %vm1268, %v1255, -inf
    %v1299 = vsel %vm1268, %v1260, -inf
    %v1300 = vsel %vm1268, %v1263, -inf
    %1301 = vmax.xlane.f32.xlu0 %v1269
    %v1302 = vpop.xlane.xlu0 %1301
    %1303 = vmax.xlane.f32.xlu0 %v1270
    %v1304 = vpop.xlane.xlu0 %1303
    %1305 = vmax.xlane.f32.xlu0 %v1271
    %v1306 = vpop.xlane.xlu0 %1305
    %1307 = vmax.xlane.f32.xlu0 %v1272
    %v1308 = vpop.xlane.xlu0 %1307
    %1309 = vmax.xlane.f32.xlu0 %v1273
    %v1310 = vpop.xlane.xlu0 %1309
    %1311 = vmax.xlane.f32.xlu0 %v1274
    %v1312 = vpop.xlane.xlu0 %1311
    %1313 = vmax.xlane.f32.xlu0 %v1275
    %v1314 = vpop.xlane.xlu0 %1313
    %1315 = vmax.xlane.f32.xlu0 %v1276
    %v1316 = vpop.xlane.xlu0 %1315
    %1317 = vmax.xlane.f32.xlu0 %v1277
    %v1318 = vpop.xlane.xlu0 %1317
    %1319 = vmax.xlane.f32.xlu0 %v1278
    %v1320 = vpop.xlane.xlu0 %1319
    %1321 = vmax.xlane.f32.xlu0 %v1279
    %v1322 = vpop.xlane.xlu0 %1321
    %1323 = vmax.xlane.f32.xlu0 %v1280
    %v1324 = vpop.xlane.xlu0 %1323
    %1325 = vmax.xlane.f32.xlu0 %v1281
    %v1326 = vpop.xlane.xlu0 %1325
    %1327 = vmax.xlane.f32.xlu0 %v1282
    %v1328 = vpop.xlane.xlu0 %1327
    %1329 = vmax.xlane.f32.xlu0 %v1283
    %v1330 = vpop.xlane.xlu0 %1329
    %1331 = vmax.xlane.f32.xlu0 %v1284
    %v1332 = vpop.xlane.xlu0 %1331
    %1333 = vmax.xlane.f32.xlu0 %v1285
    %v1334 = vpop.xlane.xlu0 %1333
    %1335 = vmax.xlane.f32.xlu0 %v1286
    %v1336 = vpop.xlane.xlu0 %1335
    %1337 = vmax.xlane.f32.xlu0 %v1287
    %v1338 = vpop.xlane.xlu0 %1337
    %1339 = vmax.xlane.f32.xlu0 %v1288
    %v1340 = vpop.xlane.xlu0 %1339
    %1341 = vmax.xlane.f32.xlu0 %v1289
    %v1342 = vpop.xlane.xlu0 %1341
    %1343 = vmax.xlane.f32.xlu0 %v1290
    %v1344 = vpop.xlane.xlu0 %1343
    %1345 = vmax.xlane.f32.xlu0 %v1291
    %v1346 = vpop.xlane.xlu0 %1345
    %1347 = vmax.xlane.f32.xlu0 %v1292
    %v1348 = vpop.xlane.xlu0 %1347
    %1349 = vmax.xlane.f32.xlu0 %v1293
    %v1350 = vpop.xlane.xlu0 %1349
    %1351 = vmax.xlane.f32.xlu0 %v1294
    %v1352 = vpop.xlane.xlu0 %1351
    %1353 = vmax.xlane.f32.xlu0 %v1295
    %v1354 = vpop.xlane.xlu0 %1353
    %1355 = vmax.xlane.f32.xlu0 %v1296
    %v1356 = vpop.xlane.xlu0 %1355
    %1357 = vmax.xlane.f32.xlu0 %v1297
    %v1358 = vpop.xlane.xlu0 %1357
    %1359 = vmax.xlane.f32.xlu0 %v1298
    %v1360 = vpop.xlane.xlu0 %1359
    %1361 = vmax.xlane.f32.xlu0 %v1299
    %v1362 = vpop.xlane.xlu0 %1361
    %1363 = vmax.xlane.f32.xlu0 %v1300
    %v1364 = vpop.xlane.xlu0 %1363
    %v1365 = vsub.f32 %v1269, %v1302
    %v1366 = vsub.f32 %v1270, %v1304
    %v1367 = vsub.f32 %v1271, %v1306
    %v1368 = vsub.f32 %v1272, %v1308
    %v1369 = vsub.f32 %v1273, %v1310
    %v1370 = vsub.f32 %v1274, %v1312
    %v1371 = vsub.f32 %v1275, %v1314
    %v1372 = vsub.f32 %v1276, %v1316
    %v1373 = vsub.f32 %v1277, %v1318
    %v1374 = vsub.f32 %v1278, %v1320
    %v1375 = vsub.f32 %v1279, %v1322
    %v1376 = vsub.f32 %v1280, %v1324
    %v1377 = vsub.f32 %v1281, %v1326
    %v1378 = vsub.f32 %v1282, %v1328
    %v1379 = vsub.f32 %v1283, %v1330
    %v1380 = vsub.f32 %v1284, %v1332
    %v1381 = vsub.f32 %v1285, %v1334
    %v1382 = vsub.f32 %v1286, %v1336
    %v1383 = vsub.f32 %v1287, %v1338
    %v1384 = vsub.f32 %v1288, %v1340
    %v1385 = vsub.f32 %v1289, %v1342
    %v1386 = vsub.f32 %v1290, %v1344
    %v1387 = vsub.f32 %v1291, %v1346
    %v1388 = vsub.f32 %v1292, %v1348
    %v1389 = vsub.f32 %v1293, %v1350
    %v1390 = vsub.f32 %v1294, %v1352
    %v1391 = vsub.f32 %v1295, %v1354
    %v1392 = vsub.f32 %v1296, %v1356
    %v1393 = vsub.f32 %v1297, %v1358
    %v1394 = vsub.f32 %v1298, %v1360
    %v1395 = vsub.f32 %v1299, %v1362
    %v1396 = vsub.f32 %v1300, %v1364
    %v1397 = vmul.f32 %v1365, 1.442695
    %v1398 = vpow.pop %v1397
    %v1399 = vmul.f32 %v1366, 1.442695
    %v1400 = vpow.pop %v1399
    %v1401 = vmul.f32 %v1367, 1.442695
    %v1402 = vpow.pop %v1401
    %v1403 = vmul.f32 %v1368, 1.442695
    %v1404 = vpow.pop %v1403
    %v1405 = vmul.f32 %v1369, 1.442695
    %v1406 = vpow.pop %v1405
    %v1407 = vmul.f32 %v1370, 1.442695
    %v1408 = vpow.pop %v1407
    %v1409 = vmul.f32 %v1371, 1.442695
    %v1410 = vpow.pop %v1409
    %v1411 = vmul.f32 %v1372, 1.442695
    %v1412 = vpow.pop %v1411
    %v1413 = vmul.f32 %v1373, 1.442695
    %v1414 = vpow.pop %v1413
    %v1415 = vmul.f32 %v1374, 1.442695
    %v1416 = vpow.pop %v1415
    %v1417 = vmul.f32 %v1375, 1.442695
    %v1418 = vpow.pop %v1417
    %v1419 = vmul.f32 %v1376, 1.442695
    %v1420 = vpow.pop %v1419
    %v1421 = vmul.f32 %v1377, 1.442695
    %v1422 = vpow.pop %v1421
    %v1423 = vmul.f32 %v1378, 1.442695
    %v1424 = vpow.pop %v1423
    %v1425 = vmul.f32 %v1379, 1.442695
    %v1426 = vpow.pop %v1425
    %v1427 = vmul.f32 %v1380, 1.442695
    %v1428 = vpow.pop %v1427
    %v1429 = vmul.f32 %v1381, 1.442695
    %v1430 = vpow.pop %v1429
    %v1431 = vmul.f32 %v1382, 1.442695
    %v1432 = vpow.pop %v1431
    %v1433 = vmul.f32 %v1383, 1.442695
    %v1434 = vpow.pop %v1433
    %v1435 = vmul.f32 %v1384, 1.442695
    %v1436 = vpow.pop %v1435
    %v1437 = vmul.f32 %v1385, 1.442695
    %v1438 = vpow.pop %v1437
    %v1439 = vmul.f32 %v1386, 1.442695
    %v1440 = vpow.pop %v1439
    %v1441 = vmul.f32 %v1387, 1.442695
    %v1442 = vpow.pop %v1441
    %v1443 = vmul.f32 %v1388, 1.442695
    %v1444 = vpow.pop %v1443
    %v1445 = vmul.f32 %v1389, 1.442695
    %v1446 = vpow.pop %v1445
    %v1447 = vmul.f32 %v1390, 1.442695
    %v1448 = vpow.pop %v1447
    %v1449 = vmul.f32 %v1391, 1.442695
    %v1450 = vpow.pop %v1449
    %v1451 = vmul.f32 %v1392, 1.442695
    %v1452 = vpow.pop %v1451
    %v1453 = vmul.f32 %v1393, 1.442695
    %v1454 = vpow.pop %v1453
    %v1455 = vmul.f32 %v1394, 1.442695
    %v1456 = vpow.pop %v1455
    %v1457 = vmul.f32 %v1395, 1.442695
    %v1458 = vpow.pop %v1457
    %v1459 = vmul.f32 %v1396, 1.442695
    %v1460 = vpow.pop %v1459
    %1461 = vadd.xlane.f32.xlu0 %v1398
    %v1462 = vpop.xlane.xlu0 %1461
    %1463 = vadd.xlane.f32.xlu0 %v1400
    %v1464 = vpop.xlane.xlu0 %1463
    %1465 = vadd.xlane.f32.xlu0 %v1402
    %v1466 = vpop.xlane.xlu0 %1465
    %1467 = vadd.xlane.f32.xlu0 %v1404
    %v1468 = vpop.xlane.xlu0 %1467
    %1469 = vadd.xlane.f32.xlu0 %v1406
    %v1470 = vpop.xlane.xlu0 %1469
    %1471 = vadd.xlane.f32.xlu0 %v1408
    %v1472 = vpop.xlane.xlu0 %1471
    %1473 = vadd.xlane.f32.xlu0 %v1410
    %v1474 = vpop.xlane.xlu0 %1473
    %1475 = vadd.xlane.f32.xlu0 %v1412
    %v1476 = vpop.xlane.xlu0 %1475
    %1477 = vadd.xlane.f32.xlu0 %v1414
    %v1478 = vpop.xlane.xlu0 %1477
    %1479 = vadd.xlane.f32.xlu0 %v1416
    %v1480 = vpop.xlane.xlu0 %1479
    %1481 = vadd.xlane.f32.xlu0 %v1418
    %v1482 = vpop.xlane.xlu0 %1481
    %1483 = vadd.xlane.f32.xlu0 %v1420
    %v1484 = vpop.xlane.xlu0 %1483
    %1485 = vadd.xlane.f32.xlu0 %v1422
    %v1486 = vpop.xlane.xlu0 %1485
    %1487 = vadd.xlane.f32.xlu0 %v1424
    %v1488 = vpop.xlane.xlu0 %1487
    %1489 = vadd.xlane.f32.xlu0 %v1426
    %v1490 = vpop.xlane.xlu0 %1489
    %1491 = vadd.xlane.f32.xlu0 %v1428
    %v1492 = vpop.xlane.xlu0 %1491
    %1493 = vadd.xlane.f32.xlu0 %v1430
    %v1494 = vpop.xlane.xlu0 %1493
    %1495 = vadd.xlane.f32.xlu0 %v1432
    %v1496 = vpop.xlane.xlu0 %1495
    %1497 = vadd.xlane.f32.xlu0 %v1434
    %v1498 = vpop.xlane.xlu0 %1497
    %1499 = vadd.xlane.f32.xlu0 %v1436
    %v1500 = vpop.xlane.xlu0 %1499
    %1501 = vadd.xlane.f32.xlu0 %v1438
    %v1502 = vpop.xlane.xlu0 %1501
    %1503 = vadd.xlane.f32.xlu0 %v1440
    %v1504 = vpop.xlane.xlu0 %1503
    %1505 = vadd.xlane.f32.xlu0 %v1442
    %v1506 = vpop.xlane.xlu0 %1505
    %1507 = vadd.xlane.f32.xlu0 %v1444
    %v1508 = vpop.xlane.xlu0 %1507
    %1509 = vadd.xlane.f32.xlu0 %v1446
    %v1510 = vpop.xlane.xlu0 %1509
    %1511 = vadd.xlane.f32.xlu0 %v1448
    %v1512 = vpop.xlane.xlu0 %1511
    %1513 = vadd.xlane.f32.xlu0 %v1450
    %v1514 = vpop.xlane.xlu0 %1513
    %1515 = vadd.xlane.f32.xlu0 %v1452
    %v1516 = vpop.xlane.xlu0 %1515
    %1517 = vadd.xlane.f32.xlu0 %v1454
    %v1518 = vpop.xlane.xlu0 %1517
    %1519 = vadd.xlane.f32.xlu0 %v1456
    %v1520 = vpop.xlane.xlu0 %1519
    %1521 = vadd.xlane.f32.xlu0 %v1458
    %v1522 = vpop.xlane.xlu0 %1521
    %1523 = vadd.xlane.f32.xlu0 %v1460
    %v1524 = vpop.xlane.xlu0 %1523
    %v1525 = vlog2.pop %v1462
    %v1526 = vmul.f32 %v1525, 0.6931472
    %v1527 = vlog2.pop %v1464
    %v1528 = vmul.f32 %v1527, 0.6931472
    %v1529 = vlog2.pop %v1466
    %v1530 = vmul.f32 %v1529, 0.6931472
    %v1531 = vlog2.pop %v1468
    %v1532 = vmul.f32 %v1531, 0.6931472
    %v1533 = vlog2.pop %v1470
    %v1534 = vmul.f32 %v1533, 0.6931472
    %v1535 = vlog2.pop %v1472
    %v1536 = vmul.f32 %v1535, 0.6931472
    %v1537 = vlog2.pop %v1474
    %v1538 = vmul.f32 %v1537, 0.6931472
    %v1539 = vlog2.pop %v1476
    %v1540 = vmul.f32 %v1539, 0.6931472
    %v1541 = vlog2.pop %v1478
    %v1542 = vmul.f32 %v1541, 0.6931472
    %v1543 = vlog2.pop %v1480
    %v1544 = vmul.f32 %v1543, 0.6931472
    %v1545 = vlog2.pop %v1482
    %v1546 = vmul.f32 %v1545, 0.6931472
    %v1547 = vlog2.pop %v1484
    %v1548 = vmul.f32 %v1547, 0.6931472
    %v1549 = vlog2.pop %v1486
    %v1550 = vmul.f32 %v1549, 0.6931472
    %v1551 = vlog2.pop %v1488
    %v1552 = vmul.f32 %v1551, 0.6931472
    %v1553 = vlog2.pop %v1490
    %v1554 = vmul.f32 %v1553, 0.6931472
    %v1555 = vlog2.pop %v1492
    %v1556 = vmul.f32 %v1555, 0.6931472
    %v1557 = vlog2.pop %v1494
    %v1558 = vmul.f32 %v1557, 0.6931472
    %v1559 = vlog2.pop %v1496
    %v1560 = vmul.f32 %v1559, 0.6931472
    %v1561 = vlog2.pop %v1498
    %v1562 = vmul.f32 %v1561, 0.6931472
    %v1563 = vlog2.pop %v1500
    %v1564 = vmul.f32 %v1563, 0.6931472
    %v1565 = vlog2.pop %v1502
    %v1566 = vmul.f32 %v1565, 0.6931472
    %v1567 = vlog2.pop %v1504
    %v1568 = vmul.f32 %v1567, 0.6931472
    %v1569 = vlog2.pop %v1506
    %v1570 = vmul.f32 %v1569, 0.6931472
    %v1571 = vlog2.pop %v1508
    %v1572 = vmul.f32 %v1571, 0.6931472
    %v1573 = vlog2.pop %v1510
    %v1574 = vmul.f32 %v1573, 0.6931472
    %v1575 = vlog2.pop %v1512
    %v1576 = vmul.f32 %v1575, 0.6931472
    %v1577 = vlog2.pop %v1514
    %v1578 = vmul.f32 %v1577, 0.6931472
    %v1579 = vlog2.pop %v1516
    %v1580 = vmul.f32 %v1579, 0.6931472
    %v1581 = vlog2.pop %v1518
    %v1582 = vmul.f32 %v1581, 0.6931472
    %v1583 = vlog2.pop %v1520
    %v1584 = vmul.f32 %v1583, 0.6931472
    %v1585 = vlog2.pop %v1522
    %v1586 = vmul.f32 %v1585, 0.6931472
    %v1587 = vlog2.pop %v1524
    %v1588 = vmul.f32 %v1587, 0.6931472
    %v1589 = vsub.f32 %v1365, %v1526
    %v1590 = vsub.f32 %v1366, %v1528
    %v1591 = vsub.f32 %v1367, %v1530
    %v1592 = vsub.f32 %v1368, %v1532
    %v1593 = vsub.f32 %v1369, %v1534
    %v1594 = vsub.f32 %v1370, %v1536
    %v1595 = vsub.f32 %v1371, %v1538
    %v1596 = vsub.f32 %v1372, %v1540
    %v1597 = vsub.f32 %v1373, %v1542
    %v1598 = vsub.f32 %v1374, %v1544
    %v1599 = vsub.f32 %v1375, %v1546
    %v1600 = vsub.f32 %v1376, %v1548
    %v1601 = vsub.f32 %v1377, %v1550
    %v1602 = vsub.f32 %v1378, %v1552
    %v1603 = vsub.f32 %v1379, %v1554
    %v1604 = vsub.f32 %v1380, %v1556
    %v1605 = vsub.f32 %v1381, %v1558
    %v1606 = vsub.f32 %v1382, %v1560
    %v1607 = vsub.f32 %v1383, %v1562
    %v1608 = vsub.f32 %v1384, %v1564
    %v1609 = vsub.f32 %v1385, %v1566
    %v1610 = vsub.f32 %v1386, %v1568
    %v1611 = vsub.f32 %v1387, %v1570
    %v1612 = vsub.f32 %v1388, %v1572
    %v1613 = vsub.f32 %v1389, %v1574
    %v1614 = vsub.f32 %v1390, %v1576
    %v1615 = vsub.f32 %v1391, %v1578
    %v1616 = vsub.f32 %v1392, %v1580
    %v1617 = vsub.f32 %v1393, %v1582
    %v1618 = vsub.f32 %v1394, %v1584
    %v1619 = vsub.f32 %v1395, %v1586
    %v1620 = vsub.f32 %v1396, %v1588
    %1621 = vst [vmem:[#allocation10] sm:$0xff] %v1589
    %1622 = vst [vmem:[#allocation10 + $0x8] sm:$0xff] %v1590
    %1623 = vst [vmem:[#allocation10 + $0x10] sm:$0xff] %v1591
    %1624 = vst [vmem:[#allocation10 + $0x18] sm:$0xff] %v1592
    %1625 = vst [vmem:[#allocation10 + $0x20] sm:$0xff] %v1593
    %1626 = vst [vmem:[#allocation10 + $0x28] sm:$0xff] %v1594
    %1627 = vst [vmem:[#allocation10 + $0x30] sm:$0xff] %v1595
    %1628 = vst [vmem:[#allocation10 + $0x38] sm:$0xff] %v1596
    %1629 = vst [vmem:[#allocation10 + $0x40] sm:$0xff] %v1597
    %1630 = vst [vmem:[#allocation10 + $0x48] sm:$0xff] %v1598
    %1631 = vst [vmem:[#allocation10 + $0x50] sm:$0xff] %v1599
    %1632 = vst [vmem:[#allocation10 + $0x58] sm:$0xff] %v1600
    %1633 = vst [vmem:[#allocation10 + $0x60] sm:$0xff] %v1601
    %1634 = vst [vmem:[#allocation10 + $0x68] sm:$0xff] %v1602
    %1635 = vst [vmem:[#allocation10 + $0x70] sm:$0xff] %v1603
    %1636 = vst [vmem:[#allocation10 + $0x78] sm:$0xff] %v1604
    %1637 = vst [vmem:[#allocation10 + $0x80] sm:$0xff] %v1605
    %1638 = vst [vmem:[#allocation10 + $0x88] sm:$0xff] %v1606
    %1639 = vst [vmem:[#allocation10 + $0x90] sm:$0xff] %v1607
    %1640 = vst [vmem:[#allocation10 + $0x98] sm:$0xff] %v1608
    %1641 = vst [vmem:[#allocation10 + $0xa0] sm:$0xff] %v1609
    %1642 = vst [vmem:[#allocation10 + $0xa8] sm:$0xff] %v1610
    %1643 = vst [vmem:[#allocation10 + $0xb0] sm:$0xff] %v1611
    %1644 = vst [vmem:[#allocation10 + $0xb8] sm:$0xff] %v1612
    %1645 = vst [vmem:[#allocation10 + $0xc0] sm:$0xff] %v1613
    %1646 = vst [vmem:[#allocation10 + $0xc8] sm:$0xff] %v1614
    %1647 = vst [vmem:[#allocation10 + $0xd0] sm:$0xff] %v1615
    %1648 = vst [vmem:[#allocation10 + $0xd8] sm:$0xff] %v1616
    %1649 = vst [vmem:[#allocation10 + $0xe0] sm:$0xff] %v1617
    %1650 = vst [vmem:[#allocation10 + $0xe8] sm:$0xff] %v1618
    %1651 = vst [vmem:[#allocation10 + $0xf0] sm:$0xff] %v1619
    %1652 = vst [vmem:[#allocation10 + $0xf8] sm:$0xff] %v1620
    // Predicated region
    $region42: #{tpu_custom_call.1} parent=1 // pred_check
      _
    $region43: #{tpu_custom_call.1} parent=1 // pred_check_branch
      %1654 = sbr.rel (0) target = $region45
    $region44: #{tpu_custom_call.1} parent=1 // pred_region
      %s1656 = ssub.s32 4096, 4096
      %1657 = vsyncadd [#allocation4], %s1656
      %s1658 = sshll.u32 [#allocation10], 4
      %s1659 = int_to_ptr.vmem [resolvable:$true] %s1658
      %1664 = dma.vmem_to_hbm [thread:$0]  %s1659, 4096, %s6, [#allocation4], 128, 128, 8
    $region45: #{tpu_custom_call.1} parent=1 // pred_fallthru
      _
    // Predicated region
    $region46: #{tpu_custom_call.1} parent=1 // pred_check
      _
    $region47: #{tpu_custom_call.1} parent=1 // pred_check_branch
      %1666 = sbr.rel (0) target = $region49
    $region48: #{tpu_custom_call.1} parent=1 // pred_region
      %1667 = dma.done [#allocation4], 4096
    $region49: #{tpu_custom_call.1} parent=1 // pred_fallthru
      _
    %1668 = vsyncpa [#allocation3], 1
    %1669 = vsyncpa [#allocation6], 1
    %1670 = vsyncpa [#allocation9], 1
    %1671 = vsyncpa [#allocation4], 1

</llo_original>
